<compile_context>
chip_gen: v7x
topology: tpu7x:2x2x1
jax: 0.10.0
libtpu: 0.0.40
codegen_flags: <defaults>
</compile_context>

<pallas_src>
import jax
import jax.numpy as jnp
from jax.experimental import pallas as pl
from jax.experimental.pallas import tpu as pltpu

_DEF_TILE = 512                     # row tile for big inputs (multiple of 128/256)


# ---------------------------------------------------------------------------
# helpers
# ---------------------------------------------------------------------------
def _round_up(n, m):
    return ((n + m - 1) // m) * m


def _row_tile(n):
    """Row-tile size: _DEF_TILE for large inputs, else the 16-rounded extent."""
    return _DEF_TILE if n >= _DEF_TILE else _round_up(max(n, 1), 16)


def _pad_rows(x, rows):
    return jnp.pad(x, ((0, rows - x.shape[0]), (0, 0)))


def _pad_idx(idx, rows):
    """int32 index vector -> (1, rows), padded with -1 (matches no one-hot row)."""
    idx = idx.astype(jnp.int32)
    return jnp.pad(idx, (0, rows - idx.shape[0]), constant_values=-1)[None, :]


def _cost(flops, arrays, extra_bytes=0):
    return pl.CostEstimate(
        flops=int(flops),
        transcendentals=0,
        bytes_accessed=int(sum(int(a.size) * a.dtype.itemsize for a in arrays)
                           + extra_bytes))


def _vmem_limit():
    """Generation-aware scoped-VMEM budget (v5e/v6e: 128 MiB parts, v7x: 64 MiB)."""
    try:
        cap = int(pltpu.get_tpu_info().vmem_capacity_bytes)
    except Exception:
        cap = 64 * 1024 * 1024
    return max(32 * 1024 * 1024, min((cap * 3) // 4, 100 * 1024 * 1024))


_VMEM_LIMIT = _vmem_limit()


# ---------------------------------------------------------------------------
# Stage 1: fused edge MLP (both directions, averaging, residual) + fused
#          scatter-mean of the updated edges onto nodes and graphs.
#          Accumulation happens directly in the resident output blocks.
# ---------------------------------------------------------------------------
def _make_edge_kernel(is_undirected, residual):
    def kernel(x_ref, ef_ref, dst_ref, src_ref, eb_ref,
               w1_ref, w1r_ref, b1_ref, w2_ref, b2_ref,
               invd_ref, invg_ref,
               eo_ref, nmean_ref, gmean_ref):
        f32 = jnp.float32
        cdt = x_ref.dtype                     # compute dtype (bf16)
        t = pl.program_id(0)

        @pl.when(t == 0)
        def _init():
            nmean_ref[...] = jnp.zeros_like(nmean_ref)
            gmean_ref[...] = jnp.zeros_like(gmean_ref)

        # x = [n_src | n_dst | e | g]  (reference concat order), bf16
        x = x_ref[...]                        # (T, 2Fn+Fe+Fg)
        h_fwd = jnp.dot(x, w1_ref[...], preferred_element_type=f32) + b1_ref[...]
        out_fwd = (jnp.dot(h_fwd.astype(cdt), w2_ref[...],
                           preferred_element_type=f32) + b2_ref[...])

        if is_undirected:
            # reverse edge == same x against a row-permuted W1 (src/dst swapped)
            h_rev = jnp.dot(x, w1r_ref[...], preferred_element_type=f32) + b1_ref[...]
            out_rev = (jnp.dot(h_rev.astype(cdt), w2_ref[...],
                               preferred_element_type=f32) + b2_ref[...])
            edge_out = (out_fwd + out_rev) * 0.5
        else:
            edge_out = out_fwd

        if residual:
            edge_out = edge_out + ef_ref[...]          # exact f32 residual
        eo_ref[...] = edge_out.astype(eo_ref.dtype)

        # ---- fused scatter-sum (bf16 one-hot x bf16 values on the MXU) ----
        n_pad = nmean_ref.shape[0]
        b_pad = gmean_ref.shape[0]
        tile = x.shape[0]
        node_iota = jax.lax.broadcasted_iota(jnp.int32, (n_pad, tile), 0)
        graph_iota = jax.lax.broadcasted_iota(jnp.int32, (b_pad, tile), 0)
        oh_dst = (node_iota == dst_ref[...]).astype(cdt)        # (Npad, T)
        oh_g = (graph_iota == eb_ref[...]).astype(cdt)          # (Bpad, T)

        nmean_ref[...] += jnp.dot(oh_dst, out_fwd.astype(cdt),
                                  preferred_element_type=f32)
        if is_undirected:
            oh_src = (node_iota == src_ref[...]).astype(cdt)
            nmean_ref[...] += jnp.dot(oh_src, out_rev.astype(cdt),
                                      preferred_element_type=f32)
            gmean_ref[...] += jnp.dot(oh_g, (out_fwd + out_rev).astype(cdt),
                                      preferred_element_type=f32)
        else:
            gmean_ref[...] += jnp.dot(oh_g, out_fwd.astype(cdt),
                                      preferred_element_type=f32)

        @pl.when(t == pl.num_programs(0) - 1)
        def _finalize():
            # counts precomputed in the wrapper -> just a broadcast multiply
            nmean_ref[...] = nmean_ref[...] * invd_ref[...]
            gmean_ref[...] = gmean_ref[...] * invg_ref[...]

    return kernel


def _edge_update(params, x_edge, ef32, dst_i, src_i, eb_i, inv_deg, inv_gec,
                 n_pad, b_pad, is_undirected, residual, compute_dtype, fn):
    e_pad, fx = x_edge.shape
    fe = ef32.shape[1]
    tile = _row_tile(e_pad)
    grid = (e_pad // tile,)
    hidden = params["edge_b1"].shape[1]

    w1 = params["edge_w1"].astype(compute_dtype)
    if is_undirected:
        # reverse direction: swap the n_src / n_dst row blocks of W1
        w1r = jnp.concatenate([w1[fn:2 * fn], w1[:fn], w1[2 * fn:]], axis=0)
    else:
        w1r = w1
    b1 = params["edge_b1"].astype(jnp.float32)
    w2 = params["edge_w2"].astype(compute_dtype)
    b2 = params["edge_b2"].astype(jnp.float32)

    row = lambda i: (i, 0)        # streaming row tiles
    rep = lambda i: (0, 0)        # weights / resident accumulators
    idx = pl.BlockSpec((1, tile), lambda i: (0, i))

    in_specs = [
        pl.BlockSpec((tile, fx), row),            # concatenated bf16 MLP input
        pl.BlockSpec((tile, fe), row),            # f32 edge features (residual)
        idx, idx, idx,
        pl.BlockSpec(w1.shape, rep), pl.BlockSpec(w1r.shape, rep),
        pl.BlockSpec(b1.shape, rep), pl.BlockSpec(w2.shape, rep),
        pl.BlockSpec(b2.shape, rep),
        pl.BlockSpec(inv_deg.shape, rep), pl.BlockSpec(inv_gec.shape, rep),
    ]
    out_shape = (
        jax.ShapeDtypeStruct((e_pad, fe), jnp.float32),   # final edge features
        jax.ShapeDtypeStruct((n_pad, fe), jnp.float32),   # mean of edges per node
        jax.ShapeDtypeStruct((b_pad, fe), jnp.float32),   # mean of edges per graph
    )
    out_specs = (
        pl.BlockSpec((tile, fe), row),
        pl.BlockSpec((n_pad, fe), rep),                   # resident accumulator
        pl.BlockSpec((b_pad, fe), rep),                   # resident accumulator
    )
    n_dir = 2 if is_undirected else 1
    flops = e_pad * (2 * fx * hidden * n_dir + 2 * hidden * fe * n_dir
                     + 2 * n_pad * fe * n_dir + 2 * b_pad * fe)
    cost = _cost(flops, [x_edge, ef32, w1, w2],
                 extra_bytes=4 * (e_pad * fe + n_pad * fe + b_pad * fe))

    return pl.pallas_call(
        _make_edge_kernel(is_undirected, residual),
        grid=grid,
        in_specs=in_specs,
        out_shape=out_shape,
        out_specs=out_specs,
        compiler_params=pltpu.CompilerParams(
            # resident scatter accumulators => row-tile axis is a reduction
            dimension_semantics=("arbitrary",),
            vmem_limit_bytes=_VMEM_LIMIT),
        cost_estimate=cost,
    )(x_edge, ef32, dst_i, src_i, eb_i, w1, w1r, b1, w2, b2, inv_deg, inv_gec)


# ---------------------------------------------------------------------------
# Stage 2: fused node MLP (+ residual) + node->graph scatter-mean, with the
#          global MLP (+ residual) fused into the finalize branch.
# ---------------------------------------------------------------------------
def _make_node_global_kernel(residual):
    def kernel(x_ref, nf_ref, nb_ref,
               nw1_ref, nb1_ref, nw2_ref, nb2_ref,
               emg_ref, gf_ref,
               gwe_ref, gwn_ref, gwg_ref, gb1_ref, gw2_ref, gb2_ref,
               invnc_ref,
               no_ref, go_ref, gsum):
        f32 = jnp.float32
        cdt = x_ref.dtype
        t = pl.program_id(0)

        @pl.when(t == 0)
        def _init():
            gsum[...] = jnp.zeros_like(gsum)
            go_ref[...] = jnp.zeros_like(go_ref)

        # x = [node | edge_mean_by_node | g[batch]]  (reference concat order)
        x = x_ref[...]
        h = jnp.dot(x, nw1_ref[...], preferred_element_type=f32) + nb1_ref[...]
        new_node = (jnp.dot(h.astype(cdt), nw2_ref[...],
                            preferred_element_type=f32) + nb2_ref[...])

        # scatter-sum of PRE-residual updated nodes onto graphs (bf16 MXU)
        b_pad = gsum.shape[0]
        tile = x.shape[0]
        graph_iota = jax.lax.broadcasted_iota(jnp.int32, (b_pad, tile), 0)
        oh = (graph_iota == nb_ref[...]).astype(cdt)
        gsum[...] += jnp.dot(oh, new_node.astype(cdt), preferred_element_type=f32)

        if residual:
            node_out = new_node + nf_ref[...]          # exact f32 residual
        else:
            node_out = new_node
        no_ref[...] = node_out.astype(no_ref.dtype)

        @pl.when(t == pl.num_programs(0) - 1)
        def _finalize():
            # fused global stage: x_g = [edge_mean_g | node_mean_g | global]
            nm_g = gsum[...] * invnc_ref[...]                        # (Bpad, Fn)
            em_g = emg_ref[...]                                      # (Bpad, Fe)
            gf = gf_ref[...]                                         # (Bpad, Fg) f32
            hg = (jnp.dot(em_g.astype(cdt), gwe_ref[...], preferred_element_type=f32)
                  + jnp.dot(nm_g.astype(cdt), gwn_ref[...], preferred_element_type=f32)
                  + jnp.dot(gf.astype(cdt), gwg_ref[...], preferred_element_type=f32)
                  + gb1_ref[...])
            gout = (jnp.dot(hg.astype(cdt), gw2_ref[...],
                            preferred_element_type=f32) + gb2_ref[...])
            if residual:
                gout = gout + gf
            go_ref[...] = gout.astype(go_ref.dtype)

    return kernel


def _node_global_update(params, x_node, nf32, nb_i, emg, gf_p, inv_nc,
                        b_pad, residual, compute_dtype):
    n_pad, fx = x_node.shape
    fn = nf32.shape[1]
    fe = emg.shape[1]
    fg = gf_p.shape[1]
    tile = _row_tile(n_pad)
    grid = (n_pad // tile,)
    hidden = params["node_b1"].shape[1]

    nw1 = params["node_w1"].astype(compute_dtype)
    nb1 = params["node_b1"].astype(jnp.float32)
    nw2 = params["node_w2"].astype(compute_dtype)
    nb2 = params["node_b2"].astype(jnp.float32)

    gw1 = params["global_w1"].astype(compute_dtype)
    # reference concat order is [edge_mean | node_mean | global]
    gwe, gwn, gwg = gw1[:fe], gw1[fe:fe + fn], gw1[fe + fn:]
    gb1 = params["global_b1"].astype(jnp.float32)
    gw2 = params["global_w2"].astype(compute_dtype)
    gb2 = params["global_b2"].astype(jnp.float32)

    row = lambda i: (i, 0)
    rep = lambda i: (0, 0)

    in_specs = [
        pl.BlockSpec((tile, fx), row),            # concatenated bf16 MLP input
        pl.BlockSpec((tile, fn), row),            # f32 node features (residual)
        pl.BlockSpec((1, tile), lambda i: (0, i)),
        pl.BlockSpec(nw1.shape, rep), pl.BlockSpec(nb1.shape, rep),
        pl.BlockSpec(nw2.shape, rep), pl.BlockSpec(nb2.shape, rep),
        pl.BlockSpec(emg.shape, rep), pl.BlockSpec(gf_p.shape, rep),
        pl.BlockSpec(gwe.shape, rep), pl.BlockSpec(gwn.shape, rep),
        pl.BlockSpec(gwg.shape, rep), pl.BlockSpec(gb1.shape, rep),
        pl.BlockSpec(gw2.shape, rep), pl.BlockSpec(gb2.shape, rep),
        pl.BlockSpec(inv_nc.shape, rep),
    ]
    out_shape = (
        jax.ShapeDtypeStruct((n_pad, fn), jnp.float32),   # updated nodes (+resid)
        jax.ShapeDtypeStruct((b_pad, fg), jnp.float32),   # updated globals (+resid)
    )
    out_specs = (
        pl.BlockSpec((tile, fn), row),
        pl.BlockSpec((b_pad, fg), rep),
    )
    scratch_shapes = [pltpu.VMEM((b_pad, fn), jnp.float32)]
    flops = (n_pad * (2 * fx * hidden + 2 * hidden * fn + 2 * b_pad * fn)
             + b_pad * (2 * (fe + fn + fg) * hidden + 2 * hidden * fg))
    cost = _cost(flops, [x_node, nf32, nw1, nw2, gw1, gw2],
                 extra_bytes=4 * (n_pad * fn + b_pad * fg))

    return pl.pallas_call(
        _make_node_global_kernel(residual),
        grid=grid,
        in_specs=in_specs,
        out_shape=out_shape,
        out_specs=out_specs,
        scratch_shapes=scratch_shapes,
        compiler_params=pltpu.CompilerParams(
            dimension_semantics=("arbitrary",),
            vmem_limit_bytes=_VMEM_LIMIT),
        cost_estimate=cost,
    )(x_node, nf32, nb_i, nw1, nb1, nw2, nb2, emg, gf_p,
      gwe, gwn, gwg, gb1, gw2, gb2, inv_nc)


# ---------------------------------------------------------------------------
# Parameters (deterministic init mimicking nn.Linear uniform(-1/sqrt(in), ..))
# ---------------------------------------------------------------------------
def init_linear(key, in_f, out_f):
    k1, k2 = jax.random.split(key)
    bound = float(in_f) ** -0.5
    w = jax.random.uniform(k1, (in_f, out_f), jnp.float32, -bound, bound)
    b = jax.random.uniform(k2, (1, out_f), jnp.float32, -bound, bound)
    return w, b


def init_params(key, n_node_features, n_edge_features, n_global_features, hidden=32):
    ks = jax.random.split(key, 6)
    p = {}
    p["edge_w1"], p["edge_b1"] = init_linear(
        ks[0], 2 * n_node_features + n_edge_features + n_global_features, hidden)
    p["edge_w2"], p["edge_b2"] = init_linear(ks[1], hidden, n_edge_features)
    p["node_w1"], p["node_b1"] = init_linear(
        ks[2], n_node_features + n_edge_features + n_global_features, hidden)
    p["node_w2"], p["node_b2"] = init_linear(ks[3], hidden, n_node_features)
    p["global_w1"], p["global_b1"] = init_linear(
        ks[4], n_node_features + n_edge_features + n_global_features, hidden)
    p["global_w2"], p["global_b2"] = init_linear(ks[5], hidden, n_global_features)
    return p


# ---------------------------------------------------------------------------
# GraphNetwork forward
# ---------------------------------------------------------------------------
def graph_network_forward(params, node_features, edge_index, edge_features,
                          global_features, batch=None,
                          is_undirected=True, residual_connection=True,
                          compute_dtype=jnp.bfloat16):
    node_features = node_features.astype(jnp.float32)
    edge_features = edge_features.astype(jnp.float32)
    global_features = global_features.astype(jnp.float32)

    n, fn = node_features.shape
    e, fe = edge_features.shape
    b, fg = global_features.shape

    if batch is None:
        batch = jnp.zeros((n,), dtype=jnp.int32)
    batch = batch.astype(jnp.int32)

    src = edge_index[0].astype(jnp.int32)
    dst = edge_index[1].astype(jnp.int32)
    # NOTE: reference maps the reversed edge to batch[dst]; identical to
    # batch[src] for standard batched graphs (edges never cross graphs).
    eb = jnp.take(batch, src, axis=0)

    e_pad = _round_up(e, _row_tile(e))
    n_pad = _round_up(n, _row_tile(n))
    b_pad = _round_up(b, _row_tile(b))

    # ---- scatter-mean counts precomputed once (keeps XLU/divides out of kernels)
    ones_e = jnp.ones((e,), jnp.float32)
    deg = jax.ops.segment_sum(ones_e, dst, num_segments=n)
    if is_undirected:
        deg = deg + jax.ops.segment_sum(ones_e, src, num_segments=n)
    ge_cnt = jax.ops.segment_sum(ones_e, eb, num_segments=b)
    if is_undirected:
        ge_cnt = ge_cnt * 2.0
    nc = jax.ops.segment_sum(jnp.ones((n,), jnp.float32), batch, num_segments=b)
    inv_deg = _pad_rows((1.0 / jnp.maximum(deg, 1.0))[:, None], n_pad)
    inv_gec = _pad_rows((1.0 / jnp.maximum(ge_cnt, 1.0))[:, None], b_pad)
    inv_nc = _pad_rows((1.0 / jnp.maximum(nc, 1.0))[:, None], b_pad)

    nf_c = node_features.astype(compute_dtype)
    gf_c = global_features.astype(compute_dtype)
    ef_c = edge_features.astype(compute_dtype)

    # ---- gathers + concat (XLA glue) + row padding ----------------------------
    # TODO(synk): replace these jnp.take gathers with in-kernel gathers
    # (scalar-prefetch indices + manual DMA) to remove the gathered-copy HBM trip.
    x_edge = _pad_rows(
        jnp.concatenate([jnp.take(nf_c, src, axis=0),
                         jnp.take(nf_c, dst, axis=0),
                         ef_c,
                         jnp.take(gf_c, eb, axis=0)], axis=1), e_pad)
    ef32 = _pad_rows(edge_features, e_pad)
    dst_i = _pad_idx(dst, e_pad)
    src_i = _pad_idx(src, e_pad)
    eb_i = _pad_idx(eb, e_pad)

    # ---- stage 1: edge MLP (+rev dir, avg, residual) + edge scatter-means ------
    edge_out_p, em_node, em_graph = _edge_update(
        params, x_edge, ef32, dst_i, src_i, eb_i, inv_deg, inv_gec,
        n_pad, b_pad, is_undirected, residual_connection, compute_dtype, fn)

    # ---- stage 2: node MLP (+residual) + node->graph mean + fused global MLP ---
    x_node = _pad_rows(
        jnp.concatenate([nf_c,
                         em_node[:n].astype(compute_dtype),
                         jnp.take(gf_c, batch, axis=0)], axis=1), n_pad)
    nf32_p = _pad_rows(node_features, n_pad)
    nb_i = _pad_idx(batch, n_pad)
    gf_p = _pad_rows(global_features, b_pad)

    node_out_p, glob_out_p = _node_global_update(
        params, x_node, nf32_p, nb_i, em_graph, gf_p, inv_nc,
        b_pad, residual_connection, compute_dtype)

    return node_out_p[:n], edge_out_p[:e], glob_out_p[:b]


# ---------------------------------------------------------------------------
# Pure-JAX reference (faithful translation of the PyTorch module) for checking
# ---------------------------------------------------------------------------
def _reference_forward(params, node_features, edge_index, edge_features,
                       global_features, batch=None, is_undirected=True,
                       residual_connection=True):
    n = node_features.shape[0]
    b = global_features.shape[0]
    e = edge_features.shape[0]
    if batch is None:
        batch = jnp.zeros((n,), dtype=jnp.int32)
    node_c, edge_c, glob_c = node_features, edge_features, global_features
    src, dst = edge_index[0], edge_index[1]
    if is_undirected:
        src2 = jnp.concatenate([src, dst])
        dst2 = jnp.concatenate([dst, src])
        ef2 = jnp.concatenate([edge_features, edge_features], axis=0)
    else:
        src2, dst2, ef2 = src, dst, edge_features
    eb = batch[src2]

    def lin(x, w, bb):
        return x @ w + bb

    def scatter_mean(vals, idx, size):
        s = jax.ops.segment_sum(vals, idx, num_segments=size)
        c = jax.ops.segment_sum(jnp.ones((vals.shape[0], 1), vals.dtype), idx,
                                num_segments=size)
        return s / jnp.maximum(c, 1.0)

    x = jnp.concatenate([node_features[src2], node_features[dst2], ef2,
                         global_features[eb]], axis=1)
    ue = lin(lin(x, params["edge_w1"], params["edge_b1"]),
             params["edge_w2"], params["edge_b2"])

    em_node = scatter_mean(ue, dst2, n)
    x = jnp.concatenate([node_features, em_node, global_features[batch]], axis=1)
    un = lin(lin(x, params["node_w1"], params["node_b1"]),
             params["node_w2"], params["node_b2"])

    em_g = scatter_mean(ue, eb, b)
    nm_g = scatter_mean(un, batch, b)
    x = jnp.concatenate([em_g, nm_g, global_features], axis=1)
    ug = lin(lin(x, params["global_w1"], params["global_b1"]),
             params["global_w2"], params["global_b2"])

    if is_undirected:
        ue = (ue[:e] + ue[e:]) * 0.5
    if residual_connection:
        ue = ue + edge_c
        un = un + node_c
        ug = ug + glob_c
    return un, ue, ug


# ---------------------------------------------------------------------------
if __name__ == "__main__":
    key = jax.random.PRNGKey(0)
    kn, ke, kg, kp = jax.random.split(key, 4)

    # Small shapes consistent with the module's forward: 2 batched graphs.
    FN, FE, FG, HIDDEN = 8, 4, 4, 32
    B = 2
    nodes_per_graph = 6
    N = B * nodes_per_graph

    node_features = jax.random.normal(kn, (N, FN), jnp.float32)
    global_features = jax.random.normal(kg, (B, FG), jnp.float32)
    batch = jnp.repeat(jnp.arange(B, dtype=jnp.int32), nodes_per_graph)

    # ring edges inside each graph (edges never cross graphs)
    srcs, dsts = [], []
    for g in range(B):
        base = g * nodes_per_graph
        for i in range(nodes_per_graph):
            srcs.append(base + i)
            dsts.append(base + (i + 1) % nodes_per_graph)
    src = jnp.array(srcs, dtype=jnp.int32)
    dst = jnp.array(dsts, dtype=jnp.int32)
    edge_index = jnp.stack([src, dst], axis=0)            # (2, E)
    E = int(src.shape[0])
    edge_features = jax.random.normal(ke, (E, FE), jnp.float32)

    params = init_params(kp, FN, FE, FG, HIDDEN)

    fwd = jax.jit(graph_network_forward)
    out_nodes, out_edges, out_glob = fwd(params, node_features, edge_index,
                                         edge_features, global_features, batch)
    jax.block_until_ready((out_nodes, out_edges, out_glob))

    assert out_nodes.shape == (N, FN)
    assert out_edges.shape == (E, FE)
    assert out_glob.shape == (B, FG)

    # numeric sanity check vs a pure-JAX f32 reference (bf16 MXU -> loose tol)
    ref_n, ref_e, ref_g = _reference_forward(
        params, node_features, edge_index, edge_features, global_features,
        batch=batch, is_undirected=True, residual_connection=True)
    for got, ref in ((out_nodes, ref_n), (out_edges, ref_e), (out_glob, ref_g)):
        assert float(jnp.max(jnp.abs(got - ref))) < 0.15

    print("KERNEL_OK")
</pallas_src>

<mosaic_0001>
module attributes {stable_mosaic.version = 11 : i64} {
  func.func @kernel(%arg0: i32, %arg1: memref<16x24xbf16, #tpu.memory_space<vmem>>, %arg2: memref<16x4xf32, #tpu.memory_space<vmem>>, %arg3: memref<1x16xi32, #tpu.memory_space<vmem>>, %arg4: memref<1x16xi32, #tpu.memory_space<vmem>>, %arg5: memref<1x16xi32, #tpu.memory_space<vmem>>, %arg6: memref<24x32xbf16, #tpu.memory_space<vmem>>, %arg7: memref<24x32xbf16, #tpu.memory_space<vmem>>, %arg8: memref<1x32xf32, #tpu.memory_space<vmem>>, %arg9: memref<32x4xbf16, #tpu.memory_space<vmem>>, %arg10: memref<1x4xf32, #tpu.memory_space<vmem>>, %arg11: memref<16x1xf32, #tpu.memory_space<vmem>>, %arg12: memref<16x1xf32, #tpu.memory_space<vmem>>, %arg13: memref<16x4xf32, #tpu.memory_space<vmem>>, %arg14: memref<16x4xf32, #tpu.memory_space<vmem>>, %arg15: memref<16x4xf32, #tpu.memory_space<vmem>>) attributes {dimension_semantics = [#tpu.dimension_semantics<arbitrary>], iteration_bounds = array<i64: 1>, scalar_prefetch = 0 : i64, scratch_operands = 0 : i64, tpu.core_type = #tpu.core_type<tc>, window_params = [{transform_indices = @transform_0, window_bounds = array<i64: 16, 24>}, {transform_indices = @transform_1, window_bounds = array<i64: 16, 4>}, {transform_indices = @transform_2, window_bounds = array<i64: 1, 16>}, {transform_indices = @transform_3, window_bounds = array<i64: 1, 16>}, {transform_indices = @transform_4, window_bounds = array<i64: 1, 16>}, {pipeline_mode = #tpu.pipeline_mode<synchronous>, transform_indices = @transform_5, window_bounds = array<i64: 24, 32>}, {pipeline_mode = #tpu.pipeline_mode<synchronous>, transform_indices = @transform_6, window_bounds = array<i64: 24, 32>}, {pipeline_mode = #tpu.pipeline_mode<synchronous>, transform_indices = @transform_7, window_bounds = array<i64: 1, 32>}, {pipeline_mode = #tpu.pipeline_mode<synchronous>, transform_indices = @transform_8, window_bounds = array<i64: 32, 4>}, {pipeline_mode = #tpu.pipeline_mode<synchronous>, transform_indices = @transform_9, window_bounds = array<i64: 1, 4>}, {pipeline_mode = #tpu.pipeline_mode<synchronous>, transform_indices = @transform_10, window_bounds = array<i64: 16, 1>}, {pipeline_mode = #tpu.pipeline_mode<synchronous>, transform_indices = @transform_11, window_bounds = array<i64: 16, 1>}, {transform_indices = @transform_12, window_bounds = array<i64: 16, 4>}, {pipeline_mode = #tpu.pipeline_mode<synchronous>, transform_indices = @transform_13, window_bounds = array<i64: 16, 4>}, {pipeline_mode = #tpu.pipeline_mode<synchronous>, transform_indices = @transform_14, window_bounds = array<i64: 16, 4>}]} {
    %c0_i32 = arith.constant 0 : i32
    %0 = arith.cmpi eq, %arg0, %c0_i32 : i32
    %1 = arith.extui %0 : i1 to i32
    %c0_i32_0 = arith.constant 0 : i32
    %2 = arith.cmpi ne, %1, %c0_i32_0 : i32
    scf.if %2 {
      %cst_49 = arith.constant 0.000000e+00 : f32
      %71 = vector.broadcast %cst_49 : f32 to vector<16x4xf32>
      %c0_50 = arith.constant 0 : index
      %c0_51 = arith.constant 0 : index
      %72 = vector.load %arg14[%c0_50, %c0_51] : memref<16x4xf32, #tpu.memory_space<vmem>>, vector<16x4xf32>
      tpu.vector_store %arg14[%c0_50, %c0_51], %71 {strides = array<i32>} : memref<16x4xf32, #tpu.memory_space<vmem>>, vector<16x4xf32>,
      %cst_52 = arith.constant 0.000000e+00 : f32
      %73 = vector.broadcast %cst_52 : f32 to vector<16x4xf32>
      %c0_53 = arith.constant 0 : index
      %c0_54 = arith.constant 0 : index
      %74 = vector.load %arg15[%c0_53, %c0_54] : memref<16x4xf32, #tpu.memory_space<vmem>>, vector<16x4xf32>
      tpu.vector_store %arg15[%c0_53, %c0_54], %73 {strides = array<i32>} : memref<16x4xf32, #tpu.memory_space<vmem>>, vector<16x4xf32>,
    } else {
    }
    %c0 = arith.constant 0 : index
    %c0_1 = arith.constant 0 : index
    %3 = vector.load %arg1[%c0, %c0_1] : memref<16x24xbf16, #tpu.memory_space<vmem>>, vector<16x24xbf16>
    %c0_2 = arith.constant 0 : index
    %c0_3 = arith.constant 0 : index
    %4 = vector.load %arg6[%c0_2, %c0_3] : memref<24x32xbf16, #tpu.memory_space<vmem>>, vector<24x32xbf16>
    %cst = arith.constant dense<0.000000e+00> : vector<16x32xf32>
    %5 = tpu.matmul %3, %4, %cst {dimension_numbers = #tpu.dot_dimension_numbers<[1], [0], [0], [1], [0, 0, 1, 1], [], []>} : vector<16x24xbf16>, vector<24x32xbf16>, vector<16x32xf32> -> vector<16x32xf32>
    %c0_4 = arith.constant 0 : index
    %c0_5 = arith.constant 0 : index
    %6 = vector.load %arg8[%c0_4, %c0_5] : memref<1x32xf32, #tpu.memory_space<vmem>>, vector<1x32xf32>
    %7 = vector.broadcast %6 : vector<1x32xf32> to vector<16x32xf32>
    %8 = arith.addf %5, %7 : vector<16x32xf32>
    %9 = arith.truncf %8 : vector<16x32xf32> to vector<16x32xbf16>
    %c0_6 = arith.constant 0 : index
    %c0_7 = arith.constant 0 : index
    %10 = vector.load %arg9[%c0_6, %c0_7] : memref<32x4xbf16, #tpu.memory_space<vmem>>, vector<32x4xbf16>
    %cst_8 = arith.constant dense<0.000000e+00> : vector<16x4xf32>
    %11 = tpu.matmul %9, %10, %cst_8 {dimension_numbers = #tpu.dot_dimension_numbers<[1], [0], [0], [1], [0, 0, 1, 1], [], []>} : vector<16x32xbf16>, vector<32x4xbf16>, vector<16x4xf32> -> vector<16x4xf32>
    %c0_9 = arith.constant 0 : index
    %c0_10 = arith.constant 0 : index
    %12 = vector.load %arg10[%c0_9, %c0_10] : memref<1x4xf32, #tpu.memory_space<vmem>>, vector<1x4xf32>
    %13 = vector.broadcast %12 : vector<1x4xf32> to vector<16x4xf32>
    %14 = arith.addf %11, %13 : vector<16x4xf32>
    %c0_11 = arith.constant 0 : index
    %c0_12 = arith.constant 0 : index
    %15 = vector.load %arg7[%c0_11, %c0_12] : memref<24x32xbf16, #tpu.memory_space<vmem>>, vector<24x32xbf16>
    %cst_13 = arith.constant dense<0.000000e+00> : vector<16x32xf32>
    %16 = tpu.matmul %3, %15, %cst_13 {dimension_numbers = #tpu.dot_dimension_numbers<[1], [0], [0], [1], [0, 0, 1, 1], [], []>} : vector<16x24xbf16>, vector<24x32xbf16>, vector<16x32xf32> -> vector<16x32xf32>
    %c0_14 = arith.constant 0 : index
    %c0_15 = arith.constant 0 : index
    %17 = vector.load %arg8[%c0_14, %c0_15] : memref<1x32xf32, #tpu.memory_space<vmem>>, vector<1x32xf32>
    %18 = vector.broadcast %17 : vector<1x32xf32> to vector<16x32xf32>
    %19 = arith.addf %16, %18 : vector<16x32xf32>
    %20 = arith.truncf %19 : vector<16x32xf32> to vector<16x32xbf16>
    %c0_16 = arith.constant 0 : index
    %c0_17 = arith.constant 0 : index
    %21 = vector.load %arg9[%c0_16, %c0_17] : memref<32x4xbf16, #tpu.memory_space<vmem>>, vector<32x4xbf16>
    %cst_18 = arith.constant dense<0.000000e+00> : vector<16x4xf32>
    %22 = tpu.matmul %20, %21, %cst_18 {dimension_numbers = #tpu.dot_dimension_numbers<[1], [0], [0], [1], [0, 0, 1, 1], [], []>} : vector<16x32xbf16>, vector<32x4xbf16>, vector<16x4xf32> -> vector<16x4xf32>
    %c0_19 = arith.constant 0 : index
    %c0_20 = arith.constant 0 : index
    %23 = vector.load %arg10[%c0_19, %c0_20] : memref<1x4xf32, #tpu.memory_space<vmem>>, vector<1x4xf32>
    %24 = vector.broadcast %23 : vector<1x4xf32> to vector<16x4xf32>
    %25 = arith.addf %22, %24 : vector<16x4xf32>
    %26 = arith.addf %14, %25 : vector<16x4xf32>
    %cst_21 = arith.constant 5.000000e-01 : f32
    %27 = vector.broadcast %cst_21 : f32 to vector<16x4xf32>
    %28 = arith.mulf %26, %27 : vector<16x4xf32>
    %c0_22 = arith.constant 0 : index
    %c0_23 = arith.constant 0 : index
    %29 = vector.load %arg2[%c0_22, %c0_23] : memref<16x4xf32, #tpu.memory_space<vmem>>, vector<16x4xf32>
    %30 = arith.addf %28, %29 : vector<16x4xf32>
    %c0_24 = arith.constant 0 : index
    %c0_25 = arith.constant 0 : index
    %31 = vector.load %arg13[%c0_24, %c0_25] : memref<16x4xf32, #tpu.memory_space<vmem>>, vector<16x4xf32>
    tpu.vector_store %arg13[%c0_24, %c0_25], %30 {strides = array<i32>} : memref<16x4xf32, #tpu.memory_space<vmem>>, vector<16x4xf32>,
    %32 = tpu.iota {dimensions = array<i32: 0>} : vector<16x16xi32>
    %33 = tpu.iota {dimensions = array<i32: 0>} : vector<16x16xi32>
    %c0_26 = arith.constant 0 : index
    %c0_27 = arith.constant 0 : index
    %34 = vector.load %arg3[%c0_26, %c0_27] : memref<1x16xi32, #tpu.memory_space<vmem>>, vector<1x16xi32>
    %35 = vector.broadcast %34 : vector<1x16xi32> to vector<16x16xi32>
    %36 = arith.cmpi eq, %32, %35 : vector<16x16xi32>
    %37 = arith.extui %36 : vector<16x16xi1> to vector<16x16xi32>
    %38 = arith.sitofp %37 : vector<16x16xi32> to vector<16x16xf32>
    %39 = arith.truncf %38 : vector<16x16xf32> to vector<16x16xbf16>
    %c0_28 = arith.constant 0 : index
    %c0_29 = arith.constant 0 : index
    %40 = vector.load %arg5[%c0_28, %c0_29] : memref<1x16xi32, #tpu.memory_space<vmem>>, vector<1x16xi32>
    %41 = vector.broadcast %40 : vector<1x16xi32> to vector<16x16xi32>
    %42 = arith.cmpi eq, %33, %41 : vector<16x16xi32>
    %43 = arith.extui %42 : vector<16x16xi1> to vector<16x16xi32>
    %44 = arith.sitofp %43 : vector<16x16xi32> to vector<16x16xf32>
    %45 = arith.truncf %44 : vector<16x16xf32> to vector<16x16xbf16>
    %c0_30 = arith.constant 0 : index
    %c0_31 = arith.constant 0 : index
    %46 = vector.load %arg14[%c0_30, %c0_31] : memref<16x4xf32, #tpu.memory_space<vmem>>, vector<16x4xf32>
    %47 = arith.truncf %14 : vector<16x4xf32> to vector<16x4xbf16>
    %cst_32 = arith.constant dense<0.000000e+00> : vector<16x4xf32>
    %48 = tpu.matmul %39, %47, %cst_32 {dimension_numbers = #tpu.dot_dimension_numbers<[1], [0], [0], [1], [0, 0, 1, 1], [], []>} : vector<16x16xbf16>, vector<16x4xbf16>, vector<16x4xf32> -> vector<16x4xf32>
    %49 = arith.addf %46, %48 : vector<16x4xf32>
    %c0_33 = arith.constant 0 : index
    %c0_34 = arith.constant 0 : index
    %50 = vector.load %arg14[%c0_33, %c0_34] : memref<16x4xf32, #tpu.memory_space<vmem>>, vector<16x4xf32>
    tpu.vector_store %arg14[%c0_33, %c0_34], %49 {strides = array<i32>} : memref<16x4xf32, #tpu.memory_space<vmem>>, vector<16x4xf32>,
    %c0_35 = arith.constant 0 : index
    %c0_36 = arith.constant 0 : index
    %51 = vector.load %arg4[%c0_35, %c0_36] : memref<1x16xi32, #tpu.memory_space<vmem>>, vector<1x16xi32>
    %52 = vector.broadcast %51 : vector<1x16xi32> to vector<16x16xi32>
    %53 = arith.cmpi eq, %32, %52 : vector<16x16xi32>
    %54 = arith.extui %53 : vector<16x16xi1> to vector<16x16xi32>
    %55 = arith.sitofp %54 : vector<16x16xi32> to vector<16x16xf32>
    %56 = arith.truncf %55 : vector<16x16xf32> to vector<16x16xbf16>
    %c0_37 = arith.constant 0 : index
    %c0_38 = arith.constant 0 : index
    %57 = vector.load %arg14[%c0_37, %c0_38] : memref<16x4xf32, #tpu.memory_space<vmem>>, vector<16x4xf32>
    %58 = arith.truncf %25 : vector<16x4xf32> to vector<16x4xbf16>
    %cst_39 = arith.constant dense<0.000000e+00> : vector<16x4xf32>
    %59 = tpu.matmul %56, %58, %cst_39 {dimension_numbers = #tpu.dot_dimension_numbers<[1], [0], [0], [1], [0, 0, 1, 1], [], []>} : vector<16x16xbf16>, vector<16x4xbf16>, vector<16x4xf32> -> vector<16x4xf32>
    %60 = arith.addf %57, %59 : vector<16x4xf32>
    %c0_40 = arith.constant 0 : index
    %c0_41 = arith.constant 0 : index
    %61 = vector.load %arg14[%c0_40, %c0_41] : memref<16x4xf32, #tpu.memory_space<vmem>>, vector<16x4xf32>
    tpu.vector_store %arg14[%c0_40, %c0_41], %60 {strides = array<i32>} : memref<16x4xf32, #tpu.memory_space<vmem>>, vector<16x4xf32>,
    %c0_42 = arith.constant 0 : index
    %c0_43 = arith.constant 0 : index
    %62 = vector.load %arg15[%c0_42, %c0_43] : memref<16x4xf32, #tpu.memory_space<vmem>>, vector<16x4xf32>
    %63 = arith.addf %14, %25 : vector<16x4xf32>
    %64 = arith.truncf %63 : vector<16x4xf32> to vector<16x4xbf16>
    %cst_44 = arith.constant dense<0.000000e+00> : vector<16x4xf32>
    %65 = tpu.matmul %45, %64, %cst_44 {dimension_numbers = #tpu.dot_dimension_numbers<[1], [0], [0], [1], [0, 0, 1, 1], [], []>} : vector<16x16xbf16>, vector<16x4xbf16>, vector<16x4xf32> -> vector<16x4xf32>
    %66 = arith.addf %62, %65 : vector<16x4xf32>
    %c0_45 = arith.constant 0 : index
    %c0_46 = arith.constant 0 : index
    %67 = vector.load %arg15[%c0_45, %c0_46] : memref<16x4xf32, #tpu.memory_space<vmem>>, vector<16x4xf32>
    tpu.vector_store %arg15[%c0_45, %c0_46], %66 {strides = array<i32>} : memref<16x4xf32, #tpu.memory_space<vmem>>, vector<16x4xf32>,
    %c0_i32_47 = arith.constant 0 : i32
    %68 = arith.cmpi eq, %arg0, %c0_i32_47 : i32
    %69 = arith.extui %68 : i1 to i32
    %c0_i32_48 = arith.constant 0 : i32
    %70 = arith.cmpi ne, %69, %c0_i32_48 : i32
    scf.if %70 {
      %c0_49 = arith.constant 0 : index
      %c0_50 = arith.constant 0 : index
      %71 = vector.load %arg14[%c0_49, %c0_50] : memref<16x4xf32, #tpu.memory_space<vmem>>, vector<16x4xf32>
      %c0_51 = arith.constant 0 : index
      %c0_52 = arith.constant 0 : index
      %72 = vector.load %arg11[%c0_51, %c0_52] : memref<16x1xf32, #tpu.memory_space<vmem>>, vector<16x1xf32>
      %73 = vector.broadcast %72 : vector<16x1xf32> to vector<16x4xf32>
      %74 = arith.mulf %71, %73 : vector<16x4xf32>
      %c0_53 = arith.constant 0 : index
      %c0_54 = arith.constant 0 : index
      %75 = vector.load %arg14[%c0_53, %c0_54] : memref<16x4xf32, #tpu.memory_space<vmem>>, vector<16x4xf32>
      tpu.vector_store %arg14[%c0_53, %c0_54], %74 {strides = array<i32>} : memref<16x4xf32, #tpu.memory_space<vmem>>, vector<16x4xf32>,
      %c0_55 = arith.constant 0 : index
      %c0_56 = arith.constant 0 : index
      %76 = vector.load %arg15[%c0_55, %c0_56] : memref<16x4xf32, #tpu.memory_space<vmem>>, vector<16x4xf32>
      %c0_57 = arith.constant 0 : index
      %c0_58 = arith.constant 0 : index
      %77 = vector.load %arg12[%c0_57, %c0_58] : memref<16x1xf32, #tpu.memory_space<vmem>>, vector<16x1xf32>
      %78 = vector.broadcast %77 : vector<16x1xf32> to vector<16x4xf32>
      %79 = arith.mulf %76, %78 : vector<16x4xf32>
      %c0_59 = arith.constant 0 : index
      %c0_60 = arith.constant 0 : index
      %80 = vector.load %arg15[%c0_59, %c0_60] : memref<16x4xf32, #tpu.memory_space<vmem>>, vector<16x4xf32>
      tpu.vector_store %arg15[%c0_59, %c0_60], %79 {strides = array<i32>} : memref<16x4xf32, #tpu.memory_space<vmem>>, vector<16x4xf32>,
    } else {
    }
    return
  }
  func.func @transform_0(%arg0: i32) -> (i32, i32) {
    %c0_i32 = arith.constant 0 : i32
    %c0_i32_0 = arith.constant 0 : i32
    return %arg0, %c0_i32 : i32, i32
  }
  func.func @transform_1(%arg0: i32) -> (i32, i32) {
    %c0_i32 = arith.constant 0 : i32
    %c0_i32_0 = arith.constant 0 : i32
    return %arg0, %c0_i32 : i32, i32
  }
  func.func @transform_2(%arg0: i32) -> (i32, i32) {
    %c0_i32 = arith.constant 0 : i32
    %c0_i32_0 = arith.constant 0 : i32
    return %c0_i32, %arg0 : i32, i32
  }
  func.func @transform_3(%arg0: i32) -> (i32, i32) {
    %c0_i32 = arith.constant 0 : i32
    %c0_i32_0 = arith.constant 0 : i32
    return %c0_i32, %arg0 : i32, i32
  }
  func.func @transform_4(%arg0: i32) -> (i32, i32) {
    %c0_i32 = arith.constant 0 : i32
    %c0_i32_0 = arith.constant 0 : i32
    return %c0_i32, %arg0 : i32, i32
  }
  func.func @transform_5(%arg0: i32) -> (i32, i32) {
    %c0_i32 = arith.constant 0 : i32
    %c0_i32_0 = arith.constant 0 : i32
    %c0_i32_1 = arith.constant 0 : i32
    return %c0_i32, %c0_i32_0 : i32, i32
  }
  func.func @transform_6(%arg0: i32) -> (i32, i32) {
    %c0_i32 = arith.constant 0 : i32
    %c0_i32_0 = arith.constant 0 : i32
    %c0_i32_1 = arith.constant 0 : i32
    return %c0_i32, %c0_i32_0 : i32, i32
  }
  func.func @transform_7(%arg0: i32) -> (i32, i32) {
    %c0_i32 = arith.constant 0 : i32
    %c0_i32_0 = arith.constant 0 : i32
    %c0_i32_1 = arith.constant 0 : i32
    return %c0_i32, %c0_i32_0 : i32, i32
  }
  func.func @transform_8(%arg0: i32) -> (i32, i32) {
    %c0_i32 = arith.constant 0 : i32
    %c0_i32_0 = arith.constant 0 : i32
    %c0_i32_1 = arith.constant 0 : i32
    return %c0_i32, %c0_i32_0 : i32, i32
  }
  func.func @transform_9(%arg0: i32) -> (i32, i32) {
    %c0_i32 = arith.constant 0 : i32
    %c0_i32_0 = arith.constant 0 : i32
    %c0_i32_1 = arith.constant 0 : i32
    return %c0_i32, %c0_i32_0 : i32, i32
  }
  func.func @transform_10(%arg0: i32) -> (i32, i32) {
    %c0_i32 = arith.constant 0 : i32
    %c0_i32_0 = arith.constant 0 : i32
    %c0_i32_1 = arith.constant 0 : i32
    return %c0_i32, %c0_i32_0 : i32, i32
  }
  func.func @transform_11(%arg0: i32) -> (i32, i32) {
    %c0_i32 = arith.constant 0 : i32
    %c0_i32_0 = arith.constant 0 : i32
    %c0_i32_1 = arith.constant 0 : i32
    return %c0_i32, %c0_i32_0 : i32, i32
  }
  func.func @transform_12(%arg0: i32) -> (i32, i32) {
    %c0_i32 = arith.constant 0 : i32
    %c0_i32_0 = arith.constant 0 : i32
    return %arg0, %c0_i32 : i32, i32
  }
  func.func @transform_13(%arg0: i32) -> (i32, i32) {
    %c0_i32 = arith.constant 0 : i32
    %c0_i32_0 = arith.constant 0 : i32
    %c0_i32_1 = arith.constant 0 : i32
    return %c0_i32, %c0_i32_0 : i32, i32
  }
  func.func @transform_14(%arg0: i32) -> (i32, i32) {
    %c0_i32 = arith.constant 0 : i32
    %c0_i32_0 = arith.constant 0 : i32
    %c0_i32_1 = arith.constant 0 : i32
    return %c0_i32, %c0_i32_0 : i32, i32
  }
}

module attributes {stable_mosaic.version = 11 : i64} {
  func.func @kernel(%arg0: i32, %arg1: memref<16x16xbf16, #tpu.memory_space<vmem>>, %arg2: memref<16x8xf32, #tpu.memory_space<vmem>>, %arg3: memref<1x16xi32, #tpu.memory_space<vmem>>, %arg4: memref<16x32xbf16, #tpu.memory_space<vmem>>, %arg5: memref<1x32xf32, #tpu.memory_space<vmem>>, %arg6: memref<32x8xbf16, #tpu.memory_space<vmem>>, %arg7: memref<1x8xf32, #tpu.memory_space<vmem>>, %arg8: memref<16x4xf32, #tpu.memory_space<vmem>>, %arg9: memref<16x4xf32, #tpu.memory_space<vmem>>, %arg10: memref<4x32xbf16, #tpu.memory_space<vmem>>, %arg11: memref<8x32xbf16, #tpu.memory_space<vmem>>, %arg12: memref<4x32xbf16, #tpu.memory_space<vmem>>, %arg13: memref<1x32xf32, #tpu.memory_space<vmem>>, %arg14: memref<32x4xbf16, #tpu.memory_space<vmem>>, %arg15: memref<1x4xf32, #tpu.memory_space<vmem>>, %arg16: memref<16x1xf32, #tpu.memory_space<vmem>>, %arg17: memref<16x8xf32, #tpu.memory_space<vmem>>, %arg18: memref<16x4xf32, #tpu.memory_space<vmem>>, %arg19: memref<16x8xf32, #tpu.memory_space<vmem>>) attributes {dimension_semantics = [#tpu.dimension_semantics<arbitrary>], iteration_bounds = array<i64: 1>, scalar_prefetch = 0 : i64, scratch_operands = 1 : i64, tpu.core_type = #tpu.core_type<tc>, window_params = [{transform_indices = @transform_0, window_bounds = array<i64: 16, 16>}, {transform_indices = @transform_1, window_bounds = array<i64: 16, 8>}, {transform_indices = @transform_2, window_bounds = array<i64: 1, 16>}, {pipeline_mode = #tpu.pipeline_mode<synchronous>, transform_indices = @transform_3, window_bounds = array<i64: 16, 32>}, {pipeline_mode = #tpu.pipeline_mode<synchronous>, transform_indices = @transform_4, window_bounds = array<i64: 1, 32>}, {pipeline_mode = #tpu.pipeline_mode<synchronous>, transform_indices = @transform_5, window_bounds = array<i64: 32, 8>}, {pipeline_mode = #tpu.pipeline_mode<synchronous>, transform_indices = @transform_6, window_bounds = array<i64: 1, 8>}, {pipeline_mode = #tpu.pipeline_mode<synchronous>, transform_indices = @transform_7, window_bounds = array<i64: 16, 4>}, {pipeline_mode = #tpu.pipeline_mode<synchronous>, transform_indices = @transform_8, window_bounds = array<i64: 16, 4>}, {pipeline_mode = #tpu.pipeline_mode<synchronous>, transform_indices = @transform_9, window_bounds = array<i64: 4, 32>}, {pipeline_mode = #tpu.pipeline_mode<synchronous>, transform_indices = @transform_10, window_bounds = array<i64: 8, 32>}, {pipeline_mode = #tpu.pipeline_mode<synchronous>, transform_indices = @transform_11, window_bounds = array<i64: 4, 32>}, {pipeline_mode = #tpu.pipeline_mode<synchronous>, transform_indices = @transform_12, window_bounds = array<i64: 1, 32>}, {pipeline_mode = #tpu.pipeline_mode<synchronous>, transform_indices = @transform_13, window_bounds = array<i64: 32, 4>}, {pipeline_mode = #tpu.pipeline_mode<synchronous>, transform_indices = @transform_14, window_bounds = array<i64: 1, 4>}, {pipeline_mode = #tpu.pipeline_mode<synchronous>, transform_indices = @transform_15, window_bounds = array<i64: 16, 1>}, {transform_indices = @transform_16, window_bounds = array<i64: 16, 8>}, {pipeline_mode = #tpu.pipeline_mode<synchronous>, transform_indices = @transform_17, window_bounds = array<i64: 16, 4>}]} {
    %c0_i32 = arith.constant 0 : i32
    %0 = arith.cmpi eq, %arg0, %c0_i32 : i32
    %1 = arith.extui %0 : i1 to i32
    %c0_i32_0 = arith.constant 0 : i32
    %2 = arith.cmpi ne, %1, %c0_i32_0 : i32
    scf.if %2 {
      %cst_24 = arith.constant 0.000000e+00 : f32
      %33 = vector.broadcast %cst_24 : f32 to vector<16x8xf32>
      %c0_25 = arith.constant 0 : index
      %c0_26 = arith.constant 0 : index
      %34 = vector.load %arg19[%c0_25, %c0_26] : memref<16x8xf32, #tpu.memory_space<vmem>>, vector<16x8xf32>
      tpu.vector_store %arg19[%c0_25, %c0_26], %33 {strides = array<i32>} : memref<16x8xf32, #tpu.memory_space<vmem>>, vector<16x8xf32>,
      %cst_27 = arith.constant 0.000000e+00 : f32
      %35 = vector.broadcast %cst_27 : f32 to vector<16x4xf32>
      %c0_28 = arith.constant 0 : index
      %c0_29 = arith.constant 0 : index
      %36 = vector.load %arg18[%c0_28, %c0_29] : memref<16x4xf32, #tpu.memory_space<vmem>>, vector<16x4xf32>
      tpu.vector_store %arg18[%c0_28, %c0_29], %35 {strides = array<i32>} : memref<16x4xf32, #tpu.memory_space<vmem>>, vector<16x4xf32>,
    } else {
    }
    %c0 = arith.constant 0 : index
    %c0_1 = arith.constant 0 : index
    %3 = vector.load %arg1[%c0, %c0_1] : memref<16x16xbf16, #tpu.memory_space<vmem>>, vector<16x16xbf16>
    %c0_2 = arith.constant 0 : index
    %c0_3 = arith.constant 0 : index
    %4 = vector.load %arg4[%c0_2, %c0_3] : memref<16x32xbf16, #tpu.memory_space<vmem>>, vector<16x32xbf16>
    %cst = arith.constant dense<0.000000e+00> : vector<16x32xf32>
    %5 = tpu.matmul %3, %4, %cst {dimension_numbers = #tpu.dot_dimension_numbers<[1], [0], [0], [1], [0, 0, 1, 1], [], []>} : vector<16x16xbf16>, vector<16x32xbf16>, vector<16x32xf32> -> vector<16x32xf32>
    %c0_4 = arith.constant 0 : index
    %c0_5 = arith.constant 0 : index
    %6 = vector.load %arg5[%c0_4, %c0_5] : memref<1x32xf32, #tpu.memory_space<vmem>>, vector<1x32xf32>
    %7 = vector.broadcast %6 : vector<1x32xf32> to vector<16x32xf32>
    %8 = arith.addf %5, %7 : vector<16x32xf32>
    %9 = arith.truncf %8 : vector<16x32xf32> to vector<16x32xbf16>
    %c0_6 = arith.constant 0 : index
    %c0_7 = arith.constant 0 : index
    %10 = vector.load %arg6[%c0_6, %c0_7] : memref<32x8xbf16, #tpu.memory_space<vmem>>, vector<32x8xbf16>
    %cst_8 = arith.constant dense<0.000000e+00> : vector<16x8xf32>
    %11 = tpu.matmul %9, %10, %cst_8 {dimension_numbers = #tpu.dot_dimension_numbers<[1], [0], [0], [1], [0, 0, 1, 1], [], []>} : vector<16x32xbf16>, vector<32x8xbf16>, vector<16x8xf32> -> vector<16x8xf32>
    %c0_9 = arith.constant 0 : index
    %c0_10 = arith.constant 0 : index
    %12 = vector.load %arg7[%c0_9, %c0_10] : memref<1x8xf32, #tpu.memory_space<vmem>>, vector<1x8xf32>
    %13 = vector.broadcast %12 : vector<1x8xf32> to vector<16x8xf32>
    %14 = arith.addf %11, %13 : vector<16x8xf32>
    %15 = tpu.iota {dimensions = array<i32: 0>} : vector<16x16xi32>
    %c0_11 = arith.constant 0 : index
    %c0_12 = arith.constant 0 : index
    %16 = vector.load %arg3[%c0_11, %c0_12] : memref<1x16xi32, #tpu.memory_space<vmem>>, vector<1x16xi32>
    %17 = vector.broadcast %16 : vector<1x16xi32> to vector<16x16xi32>
    %18 = arith.cmpi eq, %15, %17 : vector<16x16xi32>
    %19 = arith.extui %18 : vector<16x16xi1> to vector<16x16xi32>
    %20 = arith.sitofp %19 : vector<16x16xi32> to vector<16x16xf32>
    %21 = arith.truncf %20 : vector<16x16xf32> to vector<16x16xbf16>
    %c0_13 = arith.constant 0 : index
    %c0_14 = arith.constant 0 : index
    %22 = vector.load %arg19[%c0_13, %c0_14] : memref<16x8xf32, #tpu.memory_space<vmem>>, vector<16x8xf32>
    %23 = arith.truncf %14 : vector<16x8xf32> to vector<16x8xbf16>
    %cst_15 = arith.constant dense<0.000000e+00> : vector<16x8xf32>
    %24 = tpu.matmul %21, %23, %cst_15 {dimension_numbers = #tpu.dot_dimension_numbers<[1], [0], [0], [1], [0, 0, 1, 1], [], []>} : vector<16x16xbf16>, vector<16x8xbf16>, vector<16x8xf32> -> vector<16x8xf32>
    %25 = arith.addf %22, %24 : vector<16x8xf32>
    %c0_16 = arith.constant 0 : index
    %c0_17 = arith.constant 0 : index
    %26 = vector.load %arg19[%c0_16, %c0_17] : memref<16x8xf32, #tpu.memory_space<vmem>>, vector<16x8xf32>
    tpu.vector_store %arg19[%c0_16, %c0_17], %25 {strides = array<i32>} : memref<16x8xf32, #tpu.memory_space<vmem>>, vector<16x8xf32>,
    %c0_18 = arith.constant 0 : index
    %c0_19 = arith.constant 0 : index
    %27 = vector.load %arg2[%c0_18, %c0_19] : memref<16x8xf32, #tpu.memory_space<vmem>>, vector<16x8xf32>
    %28 = arith.addf %14, %27 : vector<16x8xf32>
    %c0_20 = arith.constant 0 : index
    %c0_21 = arith.constant 0 : index
    %29 = vector.load %arg17[%c0_20, %c0_21] : memref<16x8xf32, #tpu.memory_space<vmem>>, vector<16x8xf32>
    tpu.vector_store %arg17[%c0_20, %c0_21], %28 {strides = array<i32>} : memref<16x8xf32, #tpu.memory_space<vmem>>, vector<16x8xf32>,
    %c0_i32_22 = arith.constant 0 : i32
    %30 = arith.cmpi eq, %arg0, %c0_i32_22 : i32
    %31 = arith.extui %30 : i1 to i32
    %c0_i32_23 = arith.constant 0 : i32
    %32 = arith.cmpi ne, %31, %c0_i32_23 : i32
    scf.if %32 {
      %c0_24 = arith.constant 0 : index
      %c0_25 = arith.constant 0 : index
      %33 = vector.load %arg19[%c0_24, %c0_25] : memref<16x8xf32, #tpu.memory_space<vmem>>, vector<16x8xf32>
      %c0_26 = arith.constant 0 : index
      %c0_27 = arith.constant 0 : index
      %34 = vector.load %arg16[%c0_26, %c0_27] : memref<16x1xf32, #tpu.memory_space<vmem>>, vector<16x1xf32>
      %35 = vector.broadcast %34 : vector<16x1xf32> to vector<16x8xf32>
      %36 = arith.mulf %33, %35 : vector<16x8xf32>
      %c0_28 = arith.constant 0 : index
      %c0_29 = arith.constant 0 : index
      %37 = vector.load %arg8[%c0_28, %c0_29] : memref<16x4xf32, #tpu.memory_space<vmem>>, vector<16x4xf32>
      %c0_30 = arith.constant 0 : index
      %c0_31 = arith.constant 0 : index
      %38 = vector.load %arg9[%c0_30, %c0_31] : memref<16x4xf32, #tpu.memory_space<vmem>>, vector<16x4xf32>
      %39 = arith.truncf %37 : vector<16x4xf32> to vector<16x4xbf16>
      %c0_32 = arith.constant 0 : index
      %c0_33 = arith.constant 0 : index
      %40 = vector.load %arg10[%c0_32, %c0_33] : memref<4x32xbf16, #tpu.memory_space<vmem>>, vector<4x32xbf16>
      %cst_34 = arith.constant dense<0.000000e+00> : vector<16x32xf32>
      %41 = tpu.matmul %39, %40, %cst_34 {dimension_numbers = #tpu.dot_dimension_numbers<[1], [0], [0], [1], [0, 0, 1, 1], [], []>} : vector<16x4xbf16>, vector<4x32xbf16>, vector<16x32xf32> -> vector<16x32xf32>
      %42 = arith.truncf %36 : vector<16x8xf32> to vector<16x8xbf16>
      %c0_35 = arith.constant 0 : index
      %c0_36 = arith.constant 0 : index
      %43 = vector.load %arg11[%c0_35, %c0_36] : memref<8x32xbf16, #tpu.memory_space<vmem>>, vector<8x32xbf16>
      %cst_37 = arith.constant dense<0.000000e+00> : vector<16x32xf32>
      %44 = tpu.matmul %42, %43, %cst_37 {dimension_numbers = #tpu.dot_dimension_numbers<[1], [0], [0], [1], [0, 0, 1, 1], [], []>} : vector<16x8xbf16>, vector<8x32xbf16>, vector<16x32xf32> -> vector<16x32xf32>
      %45 = arith.addf %41, %44 : vector<16x32xf32>
      %46 = arith.truncf %38 : vector<16x4xf32> to vector<16x4xbf16>
      %c0_38 = arith.constant 0 : index
      %c0_39 = arith.constant 0 : index
      %47 = vector.load %arg12[%c0_38, %c0_39] : memref<4x32xbf16, #tpu.memory_space<vmem>>, vector<4x32xbf16>
      %cst_40 = arith.constant dense<0.000000e+00> : vector<16x32xf32>
      %48 = tpu.matmul %46, %47, %cst_40 {dimension_numbers = #tpu.dot_dimension_numbers<[1], [0], [0], [1], [0, 0, 1, 1], [], []>} : vector<16x4xbf16>, vector<4x32xbf16>, vector<16x32xf32> -> vector<16x32xf32>
      %49 = arith.addf %45, %48 : vector<16x32xf32>
      %c0_41 = arith.constant 0 : index
      %c0_42 = arith.constant 0 : index
      %50 = vector.load %arg13[%c0_41, %c0_42] : memref<1x32xf32, #tpu.memory_space<vmem>>, vector<1x32xf32>
      %51 = vector.broadcast %50 : vector<1x32xf32> to vector<16x32xf32>
      %52 = arith.addf %49, %51 : vector<16x32xf32>
      %53 = arith.truncf %52 : vector<16x32xf32> to vector<16x32xbf16>
      %c0_43 = arith.constant 0 : index
      %c0_44 = arith.constant 0 : index
      %54 = vector.load %arg14[%c0_43, %c0_44] : memref<32x4xbf16, #tpu.memory_space<vmem>>, vector<32x4xbf16>
      %cst_45 = arith.constant dense<0.000000e+00> : vector<16x4xf32>
      %55 = tpu.matmul %53, %54, %cst_45 {dimension_numbers = #tpu.dot_dimension_numbers<[1], [0], [0], [1], [0, 0, 1, 1], [], []>} : vector<16x32xbf16>, vector<32x4xbf16>, vector<16x4xf32> -> vector<16x4xf32>
      %c0_46 = arith.constant 0 : index
      %c0_47 = arith.constant 0 : index
      %56 = vector.load %arg15[%c0_46, %c0_47] : memref<1x4xf32, #tpu.memory_space<vmem>>, vector<1x4xf32>
      %57 = vector.broadcast %56 : vector<1x4xf32> to vector<16x4xf32>
      %58 = arith.addf %55, %57 : vector<16x4xf32>
      %59 = arith.addf %58, %38 : vector<16x4xf32>
      %c0_48 = arith.constant 0 : index
      %c0_49 = arith.constant 0 : index
      %60 = vector.load %arg18[%c0_48, %c0_49] : memref<16x4xf32, #tpu.memory_space<vmem>>, vector<16x4xf32>
      tpu.vector_store %arg18[%c0_48, %c0_49], %59 {strides = array<i32>} : memref<16x4xf32, #tpu.memory_space<vmem>>, vector<16x4xf32>,
    } else {
    }
    return
  }
  func.func @transform_0(%arg0: i32) -> (i32, i32) {
    %c0_i32 = arith.constant 0 : i32
    %c0_i32_0 = arith.constant 0 : i32
    return %arg0, %c0_i32 : i32, i32
  }
  func.func @transform_1(%arg0: i32) -> (i32, i32) {
    %c0_i32 = arith.constant 0 : i32
    %c0_i32_0 = arith.constant 0 : i32
    return %arg0, %c0_i32 : i32, i32
  }
  func.func @transform_2(%arg0: i32) -> (i32, i32) {
    %c0_i32 = arith.constant 0 : i32
    %c0_i32_0 = arith.constant 0 : i32
    return %c0_i32, %arg0 : i32, i32
  }
  func.func @transform_3(%arg0: i32) -> (i32, i32) {
    %c0_i32 = arith.constant 0 : i32
    %c0_i32_0 = arith.constant 0 : i32
    %c0_i32_1 = arith.constant 0 : i32
    return %c0_i32, %c0_i32_0 : i32, i32
  }
  func.func @transform_4(%arg0: i32) -> (i32, i32) {
    %c0_i32 = arith.constant 0 : i32
    %c0_i32_0 = arith.constant 0 : i32
    %c0_i32_1 = arith.constant 0 : i32
    return %c0_i32, %c0_i32_0 : i32, i32
  }
  func.func @transform_5(%arg0: i32) -> (i32, i32) {
    %c0_i32 = arith.constant 0 : i32
    %c0_i32_0 = arith.constant 0 : i32
    %c0_i32_1 = arith.constant 0 : i32
    return %c0_i32, %c0_i32_0 : i32, i32
  }
  func.func @transform_6(%arg0: i32) -> (i32, i32) {
    %c0_i32 = arith.constant 0 : i32
    %c0_i32_0 = arith.constant 0 : i32
    %c0_i32_1 = arith.constant 0 : i32
    return %c0_i32, %c0_i32_0 : i32, i32
  }
  func.func @transform_7(%arg0: i32) -> (i32, i32) {
    %c0_i32 = arith.constant 0 : i32
    %c0_i32_0 = arith.constant 0 : i32
    %c0_i32_1 = arith.constant 0 : i32
    return %c0_i32, %c0_i32_0 : i32, i32
  }
  func.func @transform_8(%arg0: i32) -> (i32, i32) {
    %c0_i32 = arith.constant 0 : i32
    %c0_i32_0 = arith.constant 0 : i32
    %c0_i32_1 = arith.constant 0 : i32
    return %c0_i32, %c0_i32_0 : i32, i32
  }
  func.func @transform_9(%arg0: i32) -> (i32, i32) {
    %c0_i32 = arith.constant 0 : i32
    %c0_i32_0 = arith.constant 0 : i32
    %c0_i32_1 = arith.constant 0 : i32
    return %c0_i32, %c0_i32_0 : i32, i32
  }
  func.func @transform_10(%arg0: i32) -> (i32, i32) {
    %c0_i32 = arith.constant 0 : i32
    %c0_i32_0 = arith.constant 0 : i32
    %c0_i32_1 = arith.constant 0 : i32
    return %c0_i32, %c0_i32_0 : i32, i32
  }
  func.func @transform_11(%arg0: i32) -> (i32, i32) {
    %c0_i32 = arith.constant 0 : i32
    %c0_i32_0 = arith.constant 0 : i32
    %c0_i32_1 = arith.constant 0 : i32
    return %c0_i32, %c0_i32_0 : i32, i32
  }
  func.func @transform_12(%arg0: i32) -> (i32, i32) {
    %c0_i32 = arith.constant 0 : i32
    %c0_i32_0 = arith.constant 0 : i32
    %c0_i32_1 = arith.constant 0 : i32
    return %c0_i32, %c0_i32_0 : i32, i32
  }
  func.func @transform_13(%arg0: i32) -> (i32, i32) {
    %c0_i32 = arith.constant 0 : i32
    %c0_i32_0 = arith.constant 0 : i32
    %c0_i32_1 = arith.constant 0 : i32
    return %c0_i32, %c0_i32_0 : i32, i32
  }
  func.func @transform_14(%arg0: i32) -> (i32, i32) {
    %c0_i32 = arith.constant 0 : i32
    %c0_i32_0 = arith.constant 0 : i32
    %c0_i32_1 = arith.constant 0 : i32
    return %c0_i32, %c0_i32_0 : i32, i32
  }
  func.func @transform_15(%arg0: i32) -> (i32, i32) {
    %c0_i32 = arith.constant 0 : i32
    %c0_i32_0 = arith.constant 0 : i32
    %c0_i32_1 = arith.constant 0 : i32
    return %c0_i32, %c0_i32_0 : i32, i32
  }
  func.func @transform_16(%arg0: i32) -> (i32, i32) {
    %c0_i32 = arith.constant 0 : i32
    %c0_i32_0 = arith.constant 0 : i32
    return %arg0, %c0_i32 : i32, i32
  }
  func.func @transform_17(%arg0: i32) -> (i32, i32) {
    %c0_i32 = arith.constant 0 : i32
    %c0_i32_0 = arith.constant 0 : i32
    %c0_i32_1 = arith.constant 0 : i32
    return %c0_i32, %c0_i32_0 : i32, i32
  }
}

</mosaic_0001>

<llo_original>
// kernel: graph_network_forward.2
$region0: #{graph_network_forward.2}
  #allocation0 [shape = 'u32[]', space=smem, size = 0x4, offset = 0x4, fixed_abs, tag = 'smem constant byte address 0x4 - core index']
  #allocation1 [shape = 'u32[144,128]{1,0:T(1,128)}', space=vmem, size = 0x12000, scoped, tag = 'internal scratch']
  %s0 = inlined_call_operand.vmem [shape: bf16[16,24], index: 0, kind: input, shape index: {}]
  %s1 = inlined_call_operand.vmem [shape: f32[16,4], index: 1, kind: input, shape index: {}]
  %s2 = inlined_call_operand.vmem [shape: s32[1,16], index: 2, kind: input, shape index: {}]
  %s3 = inlined_call_operand.vmem [shape: s32[1,16], index: 3, kind: input, shape index: {}]
  %s4 = inlined_call_operand.vmem [shape: s32[1,16], index: 4, kind: input, shape index: {}]
  %s5 = inlined_call_operand.vmem [shape: bf16[24,32], index: 5, kind: input, shape index: {}]
  %s6 = inlined_call_operand.vmem [shape: bf16[24,32], index: 6, kind: input, shape index: {}]
  %s7 = inlined_call_operand.vmem [shape: f32[1,32], index: 7, kind: input, shape index: {}]
  %s8 = inlined_call_operand.vmem [shape: bf16[32,4], index: 8, kind: input, shape index: {}]
  %s9 = inlined_call_operand.vmem [shape: f32[1,4], index: 9, kind: input, shape index: {}]
  %s10 = inlined_call_operand.vmem [shape: f32[16,1], index: 10, kind: input, shape index: {}]
  %s11 = inlined_call_operand.vmem [shape: f32[16,1], index: 11, kind: input, shape index: {}]
  %s12 = inlined_call_operand.vmem [shape: f32[16,4], index: 12, kind: output, shape index: {0}]
  %s13 = inlined_call_operand.vmem [shape: f32[16,4], index: 13, kind: output, shape index: {1}]
  %s14 = inlined_call_operand.vmem [shape: f32[16,4], index: 14, kind: output, shape index: {2}]
  %15 = xla_tuple %s12, %s13, %s14
  %s16 = sld [smem:[#allocation0]]
  $region82: #{graph_network_forward.2} parent=0
    _
  %s18 = ssub.s32 1, %s16
  %s19 = scalar_select 0, %s18, %s16
  // Predicated region
  $region2: #{graph_network_forward.2} parent=0 // pred_check
    _
  $region3: #{graph_network_forward.2} parent=0 // pred_check_branch
    %21 = sbr.rel (0) target = $region5
  $region4: #{graph_network_forward.2} parent=0 // pred_region
    _
  $region5: #{graph_network_forward.2} parent=0 // pred_fallthru
    _
  // Predicated region
  $region6: #{graph_network_forward.2} parent=0 // pred_check
    _
  $region7: #{graph_network_forward.2} parent=0 // pred_check_branch
    %23 = sbr.rel (0) target = $region9
  $region8: #{graph_network_forward.2} parent=0 // pred_region
    _
  $region9: #{graph_network_forward.2} parent=0 // pred_fallthru
    _
  // Predicated region
  $region10: #{graph_network_forward.2} parent=0 // pred_check
    _
  $region11: #{graph_network_forward.2} parent=0 // pred_check_branch
    %25 = sbr.rel (0) target = $region13
  $region12: #{graph_network_forward.2} parent=0 // pred_region
    _
  $region13: #{graph_network_forward.2} parent=0 // pred_fallthru
    _
  // Predicated region
  $region14: #{graph_network_forward.2} parent=0 // pred_check
    _
  $region15: #{graph_network_forward.2} parent=0 // pred_check_branch
    %27 = sbr.rel (0) target = $region17
  $region16: #{graph_network_forward.2} parent=0 // pred_region
    _
  $region17: #{graph_network_forward.2} parent=0 // pred_fallthru
    _
  // Predicated region
  $region18: #{graph_network_forward.2} parent=0 // pred_check
    _
  $region19: #{graph_network_forward.2} parent=0 // pred_check_branch
    %29 = sbr.rel (0) target = $region21
  $region20: #{graph_network_forward.2} parent=0 // pred_region
    _
  $region21: #{graph_network_forward.2} parent=0 // pred_fallthru
    _
  // Predicated region
  $region22: #{graph_network_forward.2} parent=0 // pred_check
    _
  $region23: #{graph_network_forward.2} parent=0 // pred_check_branch
    %31 = sbr.rel (0) target = $region25
  $region24: #{graph_network_forward.2} parent=0 // pred_region
    _
  $region25: #{graph_network_forward.2} parent=0 // pred_fallthru
    _
  // Predicated region
  $region26: #{graph_network_forward.2} parent=0 // pred_check
    _
  $region27: #{graph_network_forward.2} parent=0 // pred_check_branch
    %33 = sbr.rel (0) target = $region29
  $region28: #{graph_network_forward.2} parent=0 // pred_region
    _
  $region29: #{graph_network_forward.2} parent=0 // pred_fallthru
    _
  // Predicated region
  $region30: #{graph_network_forward.2} parent=0 // pred_check
    _
  $region31: #{graph_network_forward.2} parent=0 // pred_check_branch
    %35 = sbr.rel (0) target = $region33
  $region32: #{graph_network_forward.2} parent=0 // pred_region
    _
  $region33: #{graph_network_forward.2} parent=0 // pred_fallthru
    _
  // Predicated region
  $region34: #{graph_network_forward.2} parent=0 // pred_check
    _
  $region35: #{graph_network_forward.2} parent=0 // pred_check_branch
    %37 = sbr.rel (0) target = $region37
  $region36: #{graph_network_forward.2} parent=0 // pred_region
    _
  $region37: #{graph_network_forward.2} parent=0 // pred_fallthru
    _
  // Predicated region
  $region38: #{graph_network_forward.2} parent=0 // pred_check
    _
  $region39: #{graph_network_forward.2} parent=0 // pred_check_branch
    %39 = sbr.rel (0) target = $region41
  $region40: #{graph_network_forward.2} parent=0 // pred_region
    _
  $region41: #{graph_network_forward.2} parent=0 // pred_fallthru
    _
  // Predicated region
  $region42: #{graph_network_forward.2} parent=0 // pred_check
    _
  $region43: #{graph_network_forward.2} parent=0 // pred_check_branch
    %41 = sbr.rel (0) target = $region45
  $region44: #{graph_network_forward.2} parent=0 // pred_region
    _
  $region45: #{graph_network_forward.2} parent=0 // pred_fallthru
    _
  // Predicated region
  $region46: #{graph_network_forward.2} parent=0 // pred_check
    _
  $region47: #{graph_network_forward.2} parent=0 // pred_check_branch
    %43 = sbr.rel (0) target = $region49
  $region48: #{graph_network_forward.2} parent=0 // pred_region
    _
  $region49: #{graph_network_forward.2} parent=0 // pred_fallthru
    _
  %p45 = scmp.eq.s32.totalorder 0, 0
  // Predicated region
  $region50: #{graph_network_forward.2} parent=0 // pred_check
    %p46 = pneg %p45
  $region51: #{graph_network_forward.2} parent=0 // pred_check_branch
    %48 = sbr.rel (%p46) target = $region53
  $region52: #{graph_network_forward.2} parent=0 // pred_region
    %vm49 = vcmask 31744
    %50 = vst.msk [vmem:[%s13] sm:$0xff] %vm49, 0.0
    %51 = vst.msk [vmem:[%s13 + $0x8] sm:$0xff] %vm49, 0.0
    %52 = vst.msk [vmem:[%s14] sm:$0xff] %vm49, 0.0
    %53 = vst.msk [vmem:[%s14 + $0x8] sm:$0xff] %vm49, 0.0
  $region53: #{graph_network_forward.2} parent=0 // pred_fallthru
    _
  %v54 = vld [vmem:[%s0] sm:$0xf]
  %v55 = vld [vmem:[%s0 + $0x4] sm:$0xf]
  %v56 = vld [vmem:[%s5] sm:$0xf]
  %v57 = vld [vmem:[%s5 + $0x4] sm:$0xf]
  %v58 = vld [vmem:[%s5 + $0x8] sm:$0xf]
  %v59 = vld [vmem:[%s7] sm:$0x1]
  %v61 = vlaneseq
  %v62 = vshrl.u32 %v61, 7
  %v63 = vsub.s32 0, %v62
  %v64 = vrot.slane %v59, %v63
  %v68 = vunpack.c.l.b16 %v54
  %v69 = vunpack.c.l.b16 %v55
  %v70 = vpack.c.b16 %v69, %v68
  %v74 = vunpack.c.l.b16 %v56
  %v75 = vunpack.c.l.b16 %v57
  %v76 = vunpack.c.l.b16 %v58
  %v77 = vpack.c.b16 %v75, %v74
  %v78 = vpack.c.b16 %v76, %v76
  %vm80 = vcmask 195584
  %v82 = vsel %vm80, %v70, 0
  %vm84 = vcmask 1043456
  %v86 = vsel %vm84, %v78, 0
  %88 = vmatprep.subr.bf16.mxu0 0
  %89 = vmatpush1.bf16.msra.mxu0 %v77
  %90 = vmatprep.subr.bf16.mxu0 0
  %91 = vmatpush1.bf16.msra.mxu0 %v86
  %92 = vmatprep.subr.bf16.mxu0 0
  %93 = vmatpush1.bf16.msra.mxu0 0
  %94 = vmatprep.subr.bf16.mxu0 0
  %95 = vmatpush1.bf16.msra.mxu0 0
  %96 = vmatprep.subr.bf16.mxu0 0
  %97 = vmatpush1.bf16.msra.mxu0 0
  %98 = vmatprep.subr.bf16.mxu0 0
  %99 = vmatpush1.bf16.msra.mxu0 0
  %100 = vmatprep.subr.bf16.mxu0 0
  %101 = vmatpush1.bf16.msra.mxu0 0
  %102 = vmatprep.subr.bf16.mxu0 0
  %103 = vmatpush1.bf16.msra.mxu0 0
  %104 = vmatprep.subr.bf16.mxu0 0
  %105 = vmatpush1.bf16.msra.mxu0 0
  %106 = vmatprep.subr.bf16.mxu0 0
  %107 = vmatpush1.bf16.msra.mxu0 0
  %108 = vmatprep.subr.bf16.mxu0 0
  %109 = vmatpush1.bf16.msra.mxu0 0
  %110 = vmatprep.subr.bf16.mxu0 0
  %111 = vmatpush1.bf16.msra.mxu0 0
  %112 = vmatprep.subr.bf16.mxu0 0
  %113 = vmatpush1.bf16.msra.mxu0 0
  %114 = vmatprep.subr.bf16.mxu0 0
  %115 = vmatpush1.bf16.msra.mxu0 0
  %116 = vmatprep.subr.bf16.mxu0 0
  %117 = vmatpush1.bf16.msra.mxu0 0
  %118 = vmatprep.subr.bf16.mxu0 0
  %119 = vmatpush1.bf16.msra.mxu0 0
  %120 = vmatprep.mubr.bf16.mxu0 0
  %121 = vmatmul.mubr.bf16.gmra.mrb[0].mxu0 %v82
  %v122 = vpop.f32.mrb[0].mxu0
  %v123 = vadd.f32 %v64, %v122
  %v124 = vpop.f32.mrb[0].mxu0
  %v125 = vpop.f32.mrb[0].mxu0
  %v126 = vadd.f32 %v64, %v125
  %v127 = vpop.f32.mrb[0].mxu0
  %128 = vdwg.mxu0
  %v129 = vpack.c.bf16 %v126, %v123
  %v130 = vld [vmem:[%s8] sm:$0xf]
  %v131 = vld [vmem:[%s8 + $0x4] sm:$0xf]
  %v132 = vld [vmem:[%s8 + $0x8] sm:$0xf]
  %v133 = vld [vmem:[%s8 + $0xc] sm:$0xf]
  %v134 = vld [vmem:[%s9] sm:$0x1]
  %v136 = vlaneseq
  %v137 = vshrl.u32 %v136, 7
  %v138 = vsub.s32 0, %v137
  %v139 = vrot.slane %v134, %v138
  %v145 = vunpack.c.l.b16 %v130
  %v146 = vunpack.c.l.b16 %v131
  %v147 = vunpack.c.l.b16 %v132
  %v148 = vunpack.c.l.b16 %v133
  %v149 = vpack.c.b16 %v146, %v145
  %v150 = vpack.c.b16 %v148, %v147
  %vm153 = vcmask 261120
  %v155 = vsel %vm153, %v129, 0
  %157 = vmatprep.subr.bf16.mxu0 0
  %158 = vmatpush1.bf16.msra.mxu0 %v149
  %159 = vmatprep.subr.bf16.mxu0 0
  %160 = vmatpush1.bf16.msra.mxu0 %v150
  %161 = vmatprep.subr.bf16.mxu0 0
  %162 = vmatpush1.bf16.msra.mxu0 0
  %163 = vmatprep.subr.bf16.mxu0 0
  %164 = vmatpush1.bf16.msra.mxu0 0
  %165 = vmatprep.subr.bf16.mxu0 0
  %166 = vmatpush1.bf16.msra.mxu0 0
  %167 = vmatprep.subr.bf16.mxu0 0
  %168 = vmatpush1.bf16.msra.mxu0 0
  %169 = vmatprep.subr.bf16.mxu0 0
  %170 = vmatpush1.bf16.msra.mxu0 0
  %171 = vmatprep.subr.bf16.mxu0 0
  %172 = vmatpush1.bf16.msra.mxu0 0
  %173 = vmatprep.subr.bf16.mxu0 0
  %174 = vmatpush1.bf16.msra.mxu0 0
  %175 = vmatprep.subr.bf16.mxu0 0
  %176 = vmatpush1.bf16.msra.mxu0 0
  %177 = vmatprep.subr.bf16.mxu0 0
  %178 = vmatpush1.bf16.msra.mxu0 0
  %179 = vmatprep.subr.bf16.mxu0 0
  %180 = vmatpush1.bf16.msra.mxu0 0
  %181 = vmatprep.subr.bf16.mxu0 0
  %182 = vmatpush1.bf16.msra.mxu0 0
  %183 = vmatprep.subr.bf16.mxu0 0
  %184 = vmatpush1.bf16.msra.mxu0 0
  %185 = vmatprep.subr.bf16.mxu0 0
  %186 = vmatpush1.bf16.msra.mxu0 0
  %187 = vmatprep.subr.bf16.mxu0 0
  %188 = vmatpush1.bf16.msra.mxu0 0
  %189 = vmatprep.mubr.bf16.mxu0 0
  %190 = vmatmul.mubr.bf16.gmra.mrb[0].mxu0 %v155
  %v191 = vpop.f32.mrb[0].mxu0
  %v192 = vadd.f32 %v139, %v191
  %v193 = vpop.f32.mrb[0].mxu0
  %v194 = vpop.f32.mrb[0].mxu0
  %v195 = vadd.f32 %v139, %v194
  %v196 = vpop.f32.mrb[0].mxu0
  %197 = vdwg.mxu0
  %v198 = vld [vmem:[%s6] sm:$0xf]
  %v199 = vld [vmem:[%s6 + $0x4] sm:$0xf]
  %v200 = vld [vmem:[%s6 + $0x8] sm:$0xf]
  %v204 = vunpack.c.l.b16 %v198
  %v205 = vunpack.c.l.b16 %v199
  %v206 = vunpack.c.l.b16 %v200
  %v207 = vpack.c.b16 %v205, %v204
  %v208 = vpack.c.b16 %v206, %v206
  %v211 = vsel %vm84, %v208, 0
  %213 = vmatprep.subr.bf16.mxu0 0
  %214 = vmatpush1.bf16.msra.mxu0 %v207
  %215 = vmatprep.subr.bf16.mxu0 0
  %216 = vmatpush1.bf16.msra.mxu0 %v211
  %217 = vmatprep.subr.bf16.mxu0 0
  %218 = vmatpush1.bf16.msra.mxu0 0
  %219 = vmatprep.subr.bf16.mxu0 0
  %220 = vmatpush1.bf16.msra.mxu0 0
  %221 = vmatprep.subr.bf16.mxu0 0
  %222 = vmatpush1.bf16.msra.mxu0 0
  %223 = vmatprep.subr.bf16.mxu0 0
  %224 = vmatpush1.bf16.msra.mxu0 0
  %225 = vmatprep.subr.bf16.mxu0 0
  %226 = vmatpush1.bf16.msra.mxu0 0
  %227 = vmatprep.subr.bf16.mxu0 0
  %228 = vmatpush1.bf16.msra.mxu0 0
  %229 = vmatprep.subr.bf16.mxu0 0
  %230 = vmatpush1.bf16.msra.mxu0 0
  %231 = vmatprep.subr.bf16.mxu0 0
  %232 = vmatpush1.bf16.msra.mxu0 0
  %233 = vmatprep.subr.bf16.mxu0 0
  %234 = vmatpush1.bf16.msra.mxu0 0
  %235 = vmatprep.subr.bf16.mxu0 0
  %236 = vmatpush1.bf16.msra.mxu0 0
  %237 = vmatprep.subr.bf16.mxu0 0
  %238 = vmatpush1.bf16.msra.mxu0 0
  %239 = vmatprep.subr.bf16.mxu0 0
  %240 = vmatpush1.bf16.msra.mxu0 0
  %241 = vmatprep.subr.bf16.mxu0 0
  %242 = vmatpush1.bf16.msra.mxu0 0
  %243 = vmatprep.subr.bf16.mxu0 0
  %244 = vmatpush1.bf16.msra.mxu0 0
  %245 = vmatprep.mubr.bf16.mxu0 0
  %246 = vmatmul.mubr.bf16.gmra.mrb[0].mxu0 %v82
  %v247 = vpop.f32.mrb[0].mxu0
  %v248 = vadd.f32 %v64, %v247
  %v249 = vpop.f32.mrb[0].mxu0
  %v250 = vpop.f32.mrb[0].mxu0
  %v251 = vadd.f32 %v64, %v250
  %v252 = vpop.f32.mrb[0].mxu0
  %253 = vdwg.mxu0
  %v254 = vpack.c.bf16 %v251, %v248
  %v256 = vsel %vm153, %v254, 0
  %258 = vmatprep.subr.bf16.mxu0 0
  %259 = vmatpush1.bf16.msra.mxu0 %v149
  %260 = vmatprep.subr.bf16.mxu0 0
  %261 = vmatpush1.bf16.msra.mxu0 %v150
  %262 = vmatprep.subr.bf16.mxu0 0
  %263 = vmatpush1.bf16.msra.mxu0 0
  %264 = vmatprep.subr.bf16.mxu0 0
  %265 = vmatpush1.bf16.msra.mxu0 0
  %266 = vmatprep.subr.bf16.mxu0 0
  %267 = vmatpush1.bf16.msra.mxu0 0
  %268 = vmatprep.subr.bf16.mxu0 0
  %269 = vmatpush1.bf16.msra.mxu0 0
  %270 = vmatprep.subr.bf16.mxu0 0
  %271 = vmatpush1.bf16.msra.mxu0 0
  %272 = vmatprep.subr.bf16.mxu0 0
  %273 = vmatpush1.bf16.msra.mxu0 0
  %274 = vmatprep.subr.bf16.mxu0 0
  %275 = vmatpush1.bf16.msra.mxu0 0
  %276 = vmatprep.subr.bf16.mxu0 0
  %277 = vmatpush1.bf16.msra.mxu0 0
  %278 = vmatprep.subr.bf16.mxu0 0
  %279 = vmatpush1.bf16.msra.mxu0 0
  %280 = vmatprep.subr.bf16.mxu0 0
  %281 = vmatpush1.bf16.msra.mxu0 0
  %282 = vmatprep.subr.bf16.mxu0 0
  %283 = vmatpush1.bf16.msra.mxu0 0
  %284 = vmatprep.subr.bf16.mxu0 0
  %285 = vmatpush1.bf16.msra.mxu0 0
  %286 = vmatprep.subr.bf16.mxu0 0
  %287 = vmatpush1.bf16.msra.mxu0 0
  %288 = vmatprep.subr.bf16.mxu0 0
  %289 = vmatpush1.bf16.msra.mxu0 0
  %290 = vmatprep.mubr.bf16.mxu0 0
  %291 = vmatmul.mubr.bf16.gmra.mrb[0].mxu0 %v256
  %v292 = vpop.f32.mrb[0].mxu0
  %v293 = vadd.f32 %v139, %v292
  %v294 = vpop.f32.mrb[0].mxu0
  %v295 = vpop.f32.mrb[0].mxu0
  %v296 = vadd.f32 %v139, %v295
  %v297 = vpop.f32.mrb[0].mxu0
  %298 = vdwg.mxu0
  %v299 = vadd.f32 %v192, %v293
  %v300 = vadd.f32 %v195, %v296
  %v301 = vmul.f32 %v299, 0.5
  %v302 = vmul.f32 %v300, 0.5
  %v303 = vld [vmem:[%s1] sm:$0xff]
  %v304 = vld [vmem:[%s1 + $0x8] sm:$0xff]
  %v305 = vadd.f32 %v301, %v303
  %v306 = vadd.f32 %v302, %v304
  %vm307 = vcmask 31744
  %308 = vst.msk [vmem:[%s12] sm:$0xff] %vm307, %v305
  %309 = vst.msk [vmem:[%s12 + $0x8] sm:$0xff] %vm307, %v306
  %v310 = vlaneseq
  %v311 = vshrl.u32 %v310, 7
  %v312 = vadd.s32 %v311, 8
  %v313 = vld [vmem:[%s2] sm:$0x1]
  %v314 = vlaneseq
  %v315 = vshrl.u32 %v314, 7
  %v316 = vsub.s32 0, %v315
  %v317 = vrot.slane %v313, %v316
  %vm318 = vcmp.eq.s32.totalorder %v311, %v317
  %vm319 = vcmp.eq.s32.totalorder %v312, %v317
  %v320 = vsel %vm318, 1, 0
  %v321 = vsel %vm319, 1, 0
  %v322 = vcvt.s32.f32 %v320
  %v323 = vcvt.s32.f32 %v321
  %v324 = vpack.c.bf16 %v323, %v322
  %v325 = vld [vmem:[%s4] sm:$0x1]
  %v326 = vlaneseq
  %v327 = vshrl.u32 %v326, 7
  %v328 = vsub.s32 0, %v327
  %v329 = vrot.slane %v325, %v328
  %vm330 = vcmp.eq.s32.totalorder %v311, %v329
  %vm331 = vcmp.eq.s32.totalorder %v312, %v329
  %v332 = vsel %vm330, 1, 0
  %v333 = vsel %vm331, 1, 0
  %v334 = vcvt.s32.f32 %v332
  %v335 = vcvt.s32.f32 %v333
  %v336 = vpack.c.bf16 %v335, %v334
  %v337 = vld [vmem:[%s13] sm:$0xff]
  %v338 = vld [vmem:[%s13 + $0x8] sm:$0xff]
  %v339 = vpack.c.bf16 %v195, %v192
  %vm340 = vcmask 130048
  %v342 = vsel %vm340, %v324, 0
  %344 = vmatprep.subr.bf16.mxu0 0
  %345 = vmatpush1.bf16.msra.mxu0 %v339
  %346 = vmatprep.subr.bf16.mxu0 0
  %347 = vmatpush1.bf16.msra.mxu0 0
  %348 = vmatprep.subr.bf16.mxu0 0
  %349 = vmatpush1.bf16.msra.mxu0 0
  %350 = vmatprep.subr.bf16.mxu0 0
  %351 = vmatpush1.bf16.msra.mxu0 0
  %352 = vmatprep.subr.bf16.mxu0 0
  %353 = vmatpush1.bf16.msra.mxu0 0
  %354 = vmatprep.subr.bf16.mxu0 0
  %355 = vmatpush1.bf16.msra.mxu0 0
  %356 = vmatprep.subr.bf16.mxu0 0
  %357 = vmatpush1.bf16.msra.mxu0 0
  %358 = vmatprep.subr.bf16.mxu0 0
  %359 = vmatpush1.bf16.msra.mxu0 0
  %360 = vmatprep.subr.bf16.mxu0 0
  %361 = vmatpush1.bf16.msra.mxu0 0
  %362 = vmatprep.subr.bf16.mxu0 0
  %363 = vmatpush1.bf16.msra.mxu0 0
  %364 = vmatprep.subr.bf16.mxu0 0
  %365 = vmatpush1.bf16.msra.mxu0 0
  %366 = vmatprep.subr.bf16.mxu0 0
  %367 = vmatpush1.bf16.msra.mxu0 0
  %368 = vmatprep.subr.bf16.mxu0 0
  %369 = vmatpush1.bf16.msra.mxu0 0
  %370 = vmatprep.subr.bf16.mxu0 0
  %371 = vmatpush1.bf16.msra.mxu0 0
  %372 = vmatprep.subr.bf16.mxu0 0
  %373 = vmatpush1.bf16.msra.mxu0 0
  %374 = vmatprep.subr.bf16.mxu0 0
  %375 = vmatpush1.bf16.msra.mxu0 0
  %376 = vmatprep.mubr.bf16.mxu0 0
  %377 = vmatmul.mubr.bf16.gmra.mrb[0].mxu0 %v342
  %v378 = vpop.f32.mrb[0].mxu0
  %v379 = vadd.f32 0.0, %v378
  %v380 = vpop.f32.mrb[0].mxu0
  %v381 = vpop.f32.mrb[0].mxu0
  %v382 = vadd.f32 0.0, %v381
  %v383 = vpop.f32.mrb[0].mxu0
  %384 = vdwg.mxu0
  %v385 = vadd.f32 %v337, %v379
  %v386 = vadd.f32 %v338, %v382
  %387 = vst.msk [vmem:[%s13] sm:$0xff] %vm307, %v385
  %388 = vst.msk [vmem:[%s13 + $0x8] sm:$0xff] %vm307, %v386
  %v389 = vld [vmem:[%s3] sm:$0x1]
  %v390 = vlaneseq
  %v391 = vshrl.u32 %v390, 7
  %v392 = vsub.s32 0, %v391
  %v393 = vrot.slane %v389, %v392
  %vm394 = vcmp.eq.s32.totalorder %v311, %v393
  %vm395 = vcmp.eq.s32.totalorder %v312, %v393
  %v396 = vsel %vm394, 1, 0
  %v397 = vsel %vm395, 1, 0
  %v398 = vcvt.s32.f32 %v396
  %v399 = vcvt.s32.f32 %v397
  %v400 = vpack.c.bf16 %v399, %v398
  %v401 = vld [vmem:[%s13] sm:$0xff]
  %v402 = vld [vmem:[%s13 + $0x8] sm:$0xff]
  %v403 = vpack.c.bf16 %v296, %v293
  %v405 = vsel %vm340, %v400, 0
  %407 = vmatprep.subr.bf16.mxu0 0
  %408 = vmatpush1.bf16.msra.mxu0 %v403
  %409 = vmatprep.subr.bf16.mxu0 0
  %410 = vmatpush1.bf16.msra.mxu0 0
  %411 = vmatprep.subr.bf16.mxu0 0
  %412 = vmatpush1.bf16.msra.mxu0 0
  %413 = vmatprep.subr.bf16.mxu0 0
  %414 = vmatpush1.bf16.msra.mxu0 0
  %415 = vmatprep.subr.bf16.mxu0 0
  %416 = vmatpush1.bf16.msra.mxu0 0
  %417 = vmatprep.subr.bf16.mxu0 0
  %418 = vmatpush1.bf16.msra.mxu0 0
  %419 = vmatprep.subr.bf16.mxu0 0
  %420 = vmatpush1.bf16.msra.mxu0 0
  %421 = vmatprep.subr.bf16.mxu0 0
  %422 = vmatpush1.bf16.msra.mxu0 0
  %423 = vmatprep.subr.bf16.mxu0 0
  %424 = vmatpush1.bf16.msra.mxu0 0
  %425 = vmatprep.subr.bf16.mxu0 0
  %426 = vmatpush1.bf16.msra.mxu0 0
  %427 = vmatprep.subr.bf16.mxu0 0
  %428 = vmatpush1.bf16.msra.mxu0 0
  %429 = vmatprep.subr.bf16.mxu0 0
  %430 = vmatpush1.bf16.msra.mxu0 0
  %431 = vmatprep.subr.bf16.mxu0 0
  %432 = vmatpush1.bf16.msra.mxu0 0
  %433 = vmatprep.subr.bf16.mxu0 0
  %434 = vmatpush1.bf16.msra.mxu0 0
  %435 = vmatprep.subr.bf16.mxu0 0
  %436 = vmatpush1.bf16.msra.mxu0 0
  %437 = vmatprep.subr.bf16.mxu0 0
  %438 = vmatpush1.bf16.msra.mxu0 0
  %439 = vmatprep.mubr.bf16.mxu0 0
  %440 = vmatmul.mubr.bf16.gmra.mrb[0].mxu0 %v405
  %v441 = vpop.f32.mrb[0].mxu0
  %v442 = vadd.f32 0.0, %v441
  %v443 = vpop.f32.mrb[0].mxu0
  %v444 = vpop.f32.mrb[0].mxu0
  %v445 = vadd.f32 0.0, %v444
  %v446 = vpop.f32.mrb[0].mxu0
  %447 = vdwg.mxu0
  %v448 = vadd.f32 %v401, %v442
  %v449 = vadd.f32 %v402, %v445
  %450 = vst.msk [vmem:[%s13] sm:$0xff] %vm307, %v448
  %451 = vst.msk [vmem:[%s13 + $0x8] sm:$0xff] %vm307, %v449
  %v452 = vld [vmem:[%s14] sm:$0xff]
  %v453 = vld [vmem:[%s14 + $0x8] sm:$0xff]
  %v454 = vpack.c.bf16 %v300, %v299
  %v456 = vsel %vm340, %v336, 0
  %458 = vmatprep.subr.bf16.mxu0 0
  %459 = vmatpush1.bf16.msra.mxu0 %v454
  %460 = vmatprep.subr.bf16.mxu0 0
  %461 = vmatpush1.bf16.msra.mxu0 0
  %462 = vmatprep.subr.bf16.mxu0 0
  %463 = vmatpush1.bf16.msra.mxu0 0
  %464 = vmatprep.subr.bf16.mxu0 0
  %465 = vmatpush1.bf16.msra.mxu0 0
  %466 = vmatprep.subr.bf16.mxu0 0
  %467 = vmatpush1.bf16.msra.mxu0 0
  %468 = vmatprep.subr.bf16.mxu0 0
  %469 = vmatpush1.bf16.msra.mxu0 0
  %470 = vmatprep.subr.bf16.mxu0 0
  %471 = vmatpush1.bf16.msra.mxu0 0
  %472 = vmatprep.subr.bf16.mxu0 0
  %473 = vmatpush1.bf16.msra.mxu0 0
  %474 = vmatprep.subr.bf16.mxu0 0
  %475 = vmatpush1.bf16.msra.mxu0 0
  %476 = vmatprep.subr.bf16.mxu0 0
  %477 = vmatpush1.bf16.msra.mxu0 0
  %478 = vmatprep.subr.bf16.mxu0 0
  %479 = vmatpush1.bf16.msra.mxu0 0
  %480 = vmatprep.subr.bf16.mxu0 0
  %481 = vmatpush1.bf16.msra.mxu0 0
  %482 = vmatprep.subr.bf16.mxu0 0
  %483 = vmatpush1.bf16.msra.mxu0 0
  %484 = vmatprep.subr.bf16.mxu0 0
  %485 = vmatpush1.bf16.msra.mxu0 0
  %486 = vmatprep.subr.bf16.mxu0 0
  %487 = vmatpush1.bf16.msra.mxu0 0
  %488 = vmatprep.subr.bf16.mxu0 0
  %489 = vmatpush1.bf16.msra.mxu0 0
  %490 = vmatprep.mubr.bf16.mxu0 0
  %491 = vmatmul.mubr.bf16.gmra.mrb[0].mxu0 %v456
  %v492 = vpop.f32.mrb[0].mxu0
  %v493 = vadd.f32 0.0, %v492
  %v494 = vpop.f32.mrb[0].mxu0
  %v495 = vpop.f32.mrb[0].mxu0
  %v496 = vadd.f32 0.0, %v495
  %v497 = vpop.f32.mrb[0].mxu0
  %498 = vdwg.mxu0
  %v499 = vadd.f32 %v452, %v493
  %v500 = vadd.f32 %v453, %v496
  %501 = vst.msk [vmem:[%s14] sm:$0xff] %vm307, %v499
  %502 = vst.msk [vmem:[%s14 + $0x8] sm:$0xff] %vm307, %v500
  // Predicated region
  $region54: #{graph_network_forward.2} parent=0 // pred_check
    %p503 = pneg %p45
  $region55: #{graph_network_forward.2} parent=0 // pred_check_branch
    %505 = sbr.rel (%p503) target = $region57
  $region56: #{graph_network_forward.2} parent=0 // pred_region
    %v506 = vld [vmem:[%s13] sm:$0xff]
    %v507 = vld [vmem:[%s13 + $0x8] sm:$0xff]
    %v508 = vld [vmem:[%s10] sm:$0xff]
    %v509 = vld [vmem:[%s10 + $0x8] sm:$0xff]
    %511 = vset.pattern.permute.xlu0 0
    %512 = vperm.xlu0 %511, %v508
    %v513 = vpop.permute.xlu0 %512
    %516 = vset.pattern.permute.xlu0 0
    %517 = vperm.xlu0 %516, %v509
    %v518 = vpop.permute.xlu0 %517
    %v520 = vmul.f32 %v506, %v513
    %v521 = vmul.f32 %v507, %v518
    %522 = vst.msk [vmem:[%s13] sm:$0xff] %vm307, %v520
    %523 = vst.msk [vmem:[%s13 + $0x8] sm:$0xff] %vm307, %v521
    %v524 = vld [vmem:[%s14] sm:$0xff]
    %v525 = vld [vmem:[%s14 + $0x8] sm:$0xff]
    %v526 = vld [vmem:[%s11] sm:$0xff]
    %v527 = vld [vmem:[%s11 + $0x8] sm:$0xff]
    %529 = vset.pattern.permute.xlu0 0
    %530 = vperm.xlu0 %529, %v526
    %v531 = vpop.permute.xlu0 %530
    %534 = vset.pattern.permute.xlu0 0
    %535 = vperm.xlu0 %534, %v527
    %v536 = vpop.permute.xlu0 %535
    %v538 = vmul.f32 %v524, %v531
    %v539 = vmul.f32 %v525, %v536
    %540 = vst.msk [vmem:[%s14] sm:$0xff] %vm307, %v538
    %541 = vst.msk [vmem:[%s14 + $0x8] sm:$0xff] %vm307, %v539
  $region57: #{graph_network_forward.2} parent=0 // pred_fallthru
    _
  // Predicated region
  $region58: #{graph_network_forward.2} parent=0 // pred_check
    _
  $region59: #{graph_network_forward.2} parent=0 // pred_check_branch
    %543 = sbr.rel (0) target = $region61
  $region60: #{graph_network_forward.2} parent=0 // pred_region
    _
  $region61: #{graph_network_forward.2} parent=0 // pred_fallthru
    _
  // Predicated region
  $region62: #{graph_network_forward.2} parent=0 // pred_check
    _
  $region63: #{graph_network_forward.2} parent=0 // pred_check_branch
    %545 = sbr.rel (0) target = $region65
  $region64: #{graph_network_forward.2} parent=0 // pred_region
    _
  $region65: #{graph_network_forward.2} parent=0 // pred_fallthru
    _
  // Predicated region
  $region66: #{graph_network_forward.2} parent=0 // pred_check
    _
  $region67: #{graph_network_forward.2} parent=0 // pred_check_branch
    %547 = sbr.rel (0) target = $region69
  $region68: #{graph_network_forward.2} parent=0 // pred_region
    _
  $region69: #{graph_network_forward.2} parent=0 // pred_fallthru
    _
  // Predicated region
  $region70: #{graph_network_forward.2} parent=0 // pred_check
    _
  $region71: #{graph_network_forward.2} parent=0 // pred_check_branch
    %549 = sbr.rel (0) target = $region73
  $region72: #{graph_network_forward.2} parent=0 // pred_region
    _
  $region73: #{graph_network_forward.2} parent=0 // pred_fallthru
    _
  // Predicated region
  $region74: #{graph_network_forward.2} parent=0 // pred_check
    _
  $region75: #{graph_network_forward.2} parent=0 // pred_check_branch
    %551 = sbr.rel (0) target = $region77
  $region76: #{graph_network_forward.2} parent=0 // pred_region
    _
  $region77: #{graph_network_forward.2} parent=0 // pred_fallthru
    _
  // Predicated region
  $region78: #{graph_network_forward.2} parent=0 // pred_check
    _
  $region79: #{graph_network_forward.2} parent=0 // pred_check_branch
    %553 = sbr.rel (0) target = $region81
  $region80: #{graph_network_forward.2} parent=0 // pred_region
    _
  $region81: #{graph_network_forward.2} parent=0 // pred_fallthru
    _

// kernel: graph_network_forward.3
$region0: #{graph_network_forward.3}
  #allocation0 [shape = 'u32[]', space=smem, size = 0x4, offset = 0x4, fixed_abs, tag = 'smem constant byte address 0x4 - core index']
  #allocation1 [shape = 'u32[144,128]{1,0:T(1,128)}', space=vmem, size = 0x12000, scoped, tag = 'internal scratch']
  #allocation2 [shape = 'f32[16,8]{1,0:T(8,128)}', space=vmem, size = 0x2000, scoped, tag = 'scratch operand']
  %s0 = inlined_call_operand.vmem [shape: bf16[16,16], index: 0, kind: input, shape index: {}]
  %s1 = inlined_call_operand.vmem [shape: f32[16,8], index: 1, kind: input, shape index: {}]
  %s2 = inlined_call_operand.vmem [shape: s32[1,16], index: 2, kind: input, shape index: {}]
  %s3 = inlined_call_operand.vmem [shape: bf16[16,32], index: 3, kind: input, shape index: {}]
  %s4 = inlined_call_operand.vmem [shape: f32[1,32], index: 4, kind: input, shape index: {}]
  %s5 = inlined_call_operand.vmem [shape: bf16[32,8], index: 5, kind: input, shape index: {}]
  %s6 = inlined_call_operand.vmem [shape: f32[1,8], index: 6, kind: input, shape index: {}]
  %s7 = inlined_call_operand.vmem [shape: f32[16,4], index: 7, kind: input, shape index: {}]
  %s8 = inlined_call_operand.vmem [shape: f32[16,4], index: 8, kind: input, shape index: {}]
  %s9 = inlined_call_operand.vmem [shape: bf16[4,32], index: 9, kind: input, shape index: {}]
  %s10 = inlined_call_operand.vmem [shape: bf16[8,32], index: 10, kind: input, shape index: {}]
  %s11 = inlined_call_operand.vmem [shape: bf16[4,32], index: 11, kind: input, shape index: {}]
  %s12 = inlined_call_operand.vmem [shape: f32[1,32], index: 12, kind: input, shape index: {}]
  %s13 = inlined_call_operand.vmem [shape: bf16[32,4], index: 13, kind: input, shape index: {}]
  %s14 = inlined_call_operand.vmem [shape: f32[1,4], index: 14, kind: input, shape index: {}]
  %s15 = inlined_call_operand.vmem [shape: f32[16,1], index: 15, kind: input, shape index: {}]
  %s16 = inlined_call_operand.vmem [shape: f32[16,8], index: 16, kind: output, shape index: {0}]
  %s17 = inlined_call_operand.vmem [shape: f32[16,4], index: 17, kind: output, shape index: {1}]
  %18 = xla_tuple %s16, %s17
  %s19 = sld [smem:[#allocation0]]
  $region90: #{graph_network_forward.3} parent=0
    _
  %s21 = ssub.s32 1, %s19
  %s22 = scalar_select 0, %s21, %s19
  // Predicated region
  $region2: #{graph_network_forward.3} parent=0 // pred_check
    _
  $region3: #{graph_network_forward.3} parent=0 // pred_check_branch
    %24 = sbr.rel (0) target = $region5
  $region4: #{graph_network_forward.3} parent=0 // pred_region
    _
  $region5: #{graph_network_forward.3} parent=0 // pred_fallthru
    _
  // Predicated region
  $region6: #{graph_network_forward.3} parent=0 // pred_check
    _
  $region7: #{graph_network_forward.3} parent=0 // pred_check_branch
    %26 = sbr.rel (0) target = $region9
  $region8: #{graph_network_forward.3} parent=0 // pred_region
    _
  $region9: #{graph_network_forward.3} parent=0 // pred_fallthru
    _
  // Predicated region
  $region10: #{graph_network_forward.3} parent=0 // pred_check
    _
  $region11: #{graph_network_forward.3} parent=0 // pred_check_branch
    %28 = sbr.rel (0) target = $region13
  $region12: #{graph_network_forward.3} parent=0 // pred_region
    _
  $region13: #{graph_network_forward.3} parent=0 // pred_fallthru
    _
  // Predicated region
  $region14: #{graph_network_forward.3} parent=0 // pred_check
    _
  $region15: #{graph_network_forward.3} parent=0 // pred_check_branch
    %30 = sbr.rel (0) target = $region17
  $region16: #{graph_network_forward.3} parent=0 // pred_region
    _
  $region17: #{graph_network_forward.3} parent=0 // pred_fallthru
    _
  // Predicated region
  $region18: #{graph_network_forward.3} parent=0 // pred_check
    _
  $region19: #{graph_network_forward.3} parent=0 // pred_check_branch
    %32 = sbr.rel (0) target = $region21
  $region20: #{graph_network_forward.3} parent=0 // pred_region
    _
  $region21: #{graph_network_forward.3} parent=0 // pred_fallthru
    _
  // Predicated region
  $region22: #{graph_network_forward.3} parent=0 // pred_check
    _
  $region23: #{graph_network_forward.3} parent=0 // pred_check_branch
    %34 = sbr.rel (0) target = $region25
  $region24: #{graph_network_forward.3} parent=0 // pred_region
    _
  $region25: #{graph_network_forward.3} parent=0 // pred_fallthru
    _
  // Predicated region
  $region26: #{graph_network_forward.3} parent=0 // pred_check
    _
  $region27: #{graph_network_forward.3} parent=0 // pred_check_branch
    %36 = sbr.rel (0) target = $region29
  $region28: #{graph_network_forward.3} parent=0 // pred_region
    _
  $region29: #{graph_network_forward.3} parent=0 // pred_fallthru
    _
  // Predicated region
  $region30: #{graph_network_forward.3} parent=0 // pred_check
    _
  $region31: #{graph_network_forward.3} parent=0 // pred_check_branch
    %38 = sbr.rel (0) target = $region33
  $region32: #{graph_network_forward.3} parent=0 // pred_region
    _
  $region33: #{graph_network_forward.3} parent=0 // pred_fallthru
    _
  // Predicated region
  $region34: #{graph_network_forward.3} parent=0 // pred_check
    _
  $region35: #{graph_network_forward.3} parent=0 // pred_check_branch
    %40 = sbr.rel (0) target = $region37
  $region36: #{graph_network_forward.3} parent=0 // pred_region
    _
  $region37: #{graph_network_forward.3} parent=0 // pred_fallthru
    _
  // Predicated region
  $region38: #{graph_network_forward.3} parent=0 // pred_check
    _
  $region39: #{graph_network_forward.3} parent=0 // pred_check_branch
    %42 = sbr.rel (0) target = $region41
  $region40: #{graph_network_forward.3} parent=0 // pred_region
    _
  $region41: #{graph_network_forward.3} parent=0 // pred_fallthru
    _
  // Predicated region
  $region42: #{graph_network_forward.3} parent=0 // pred_check
    _
  $region43: #{graph_network_forward.3} parent=0 // pred_check_branch
    %44 = sbr.rel (0) target = $region45
  $region44: #{graph_network_forward.3} parent=0 // pred_region
    _
  $region45: #{graph_network_forward.3} parent=0 // pred_fallthru
    _
  // Predicated region
  $region46: #{graph_network_forward.3} parent=0 // pred_check
    _
  $region47: #{graph_network_forward.3} parent=0 // pred_check_branch
    %46 = sbr.rel (0) target = $region49
  $region48: #{graph_network_forward.3} parent=0 // pred_region
    _
  $region49: #{graph_network_forward.3} parent=0 // pred_fallthru
    _
  // Predicated region
  $region50: #{graph_network_forward.3} parent=0 // pred_check
    _
  $region51: #{graph_network_forward.3} parent=0 // pred_check_branch
    %48 = sbr.rel (0) target = $region53
  $region52: #{graph_network_forward.3} parent=0 // pred_region
    _
  $region53: #{graph_network_forward.3} parent=0 // pred_fallthru
    _
  // Predicated region
  $region54: #{graph_network_forward.3} parent=0 // pred_check
    _
  $region55: #{graph_network_forward.3} parent=0 // pred_check_branch
    %50 = sbr.rel (0) target = $region57
  $region56: #{graph_network_forward.3} parent=0 // pred_region
    _
  $region57: #{graph_network_forward.3} parent=0 // pred_fallthru
    _
  // Predicated region
  $region58: #{graph_network_forward.3} parent=0 // pred_check
    _
  $region59: #{graph_network_forward.3} parent=0 // pred_check_branch
    %52 = sbr.rel (0) target = $region61
  $region60: #{graph_network_forward.3} parent=0 // pred_region
    _
  $region61: #{graph_network_forward.3} parent=0 // pred_fallthru
    _
  // Predicated region
  $region62: #{graph_network_forward.3} parent=0 // pred_check
    _
  $region63: #{graph_network_forward.3} parent=0 // pred_check_branch
    %54 = sbr.rel (0) target = $region65
  $region64: #{graph_network_forward.3} parent=0 // pred_region
    _
  $region65: #{graph_network_forward.3} parent=0 // pred_fallthru
    _
  %p56 = scmp.eq.s32.totalorder 0, 0
  // Predicated region
  $region66: #{graph_network_forward.3} parent=0 // pred_check
    %p57 = pneg %p56
  $region67: #{graph_network_forward.3} parent=0 // pred_check_branch
    %59 = sbr.rel (%p57) target = $region69
  $region68: #{graph_network_forward.3} parent=0 // pred_region
    %vm60 = vcmask 64512
    %61 = vst.msk [vmem:[#allocation2] sm:$0xff] %vm60, 0.0
    %62 = vst.msk [vmem:[#allocation2 + $0x8] sm:$0xff] %vm60, 0.0
    %vm63 = vcmask 31744
    %64 = vst.msk [vmem:[%s17] sm:$0xff] %vm63, 0.0
    %65 = vst.msk [vmem:[%s17 + $0x8] sm:$0xff] %vm63, 0.0
  $region69: #{graph_network_forward.3} parent=0 // pred_fallthru
    _
  %v66 = vld [vmem:[%s0] sm:$0xf]
  %v67 = vld [vmem:[%s0 + $0x4] sm:$0xf]
  %v68 = vld [vmem:[%s3] sm:$0xf]
  %v69 = vld [vmem:[%s3 + $0x4] sm:$0xf]
  %v70 = vld [vmem:[%s4] sm:$0x1]
  %v72 = vlaneseq
  %v73 = vshrl.u32 %v72, 7
  %v74 = vsub.s32 0, %v73
  %v75 = vrot.slane %v70, %v74
  %v79 = vunpack.c.l.b16 %v66
  %v80 = vunpack.c.l.b16 %v67
  %v81 = vpack.c.b16 %v80, %v79
  %v84 = vunpack.c.l.b16 %v68
  %v85 = vunpack.c.l.b16 %v69
  %v86 = vpack.c.b16 %v85, %v84
  %vm88 = vcmask 130048
  %v90 = vsel %vm88, %v81, 0
  %92 = vmatprep.subr.bf16.mxu0 0
  %93 = vmatpush1.bf16.msra.mxu0 %v86
  %94 = vmatprep.subr.bf16.mxu0 0
  %95 = vmatpush1.bf16.msra.mxu0 0
  %96 = vmatprep.subr.bf16.mxu0 0
  %97 = vmatpush1.bf16.msra.mxu0 0
  %98 = vmatprep.subr.bf16.mxu0 0
  %99 = vmatpush1.bf16.msra.mxu0 0
  %100 = vmatprep.subr.bf16.mxu0 0
  %101 = vmatpush1.bf16.msra.mxu0 0
  %102 = vmatprep.subr.bf16.mxu0 0
  %103 = vmatpush1.bf16.msra.mxu0 0
  %104 = vmatprep.subr.bf16.mxu0 0
  %105 = vmatpush1.bf16.msra.mxu0 0
  %106 = vmatprep.subr.bf16.mxu0 0
  %107 = vmatpush1.bf16.msra.mxu0 0
  %108 = vmatprep.subr.bf16.mxu0 0
  %109 = vmatpush1.bf16.msra.mxu0 0
  %110 = vmatprep.subr.bf16.mxu0 0
  %111 = vmatpush1.bf16.msra.mxu0 0
  %112 = vmatprep.subr.bf16.mxu0 0
  %113 = vmatpush1.bf16.msra.mxu0 0
  %114 = vmatprep.subr.bf16.mxu0 0
  %115 = vmatpush1.bf16.msra.mxu0 0
  %116 = vmatprep.subr.bf16.mxu0 0
  %117 = vmatpush1.bf16.msra.mxu0 0
  %118 = vmatprep.subr.bf16.mxu0 0
  %119 = vmatpush1.bf16.msra.mxu0 0
  %120 = vmatprep.subr.bf16.mxu0 0
  %121 = vmatpush1.bf16.msra.mxu0 0
  %122 = vmatprep.subr.bf16.mxu0 0
  %123 = vmatpush1.bf16.msra.mxu0 0
  %124 = vmatprep.mubr.bf16.mxu0 0
  %125 = vmatmul.mubr.bf16.gmra.mrb[0].mxu0 %v90
  %v126 = vpop.f32.mrb[0].mxu0
  %v127 = vadd.f32 %v75, %v126
  %v128 = vpop.f32.mrb[0].mxu0
  %v129 = vpop.f32.mrb[0].mxu0
  %v130 = vadd.f32 %v75, %v129
  %v131 = vpop.f32.mrb[0].mxu0
  %132 = vdwg.mxu0
  %v133 = vpack.c.bf16 %v130, %v127
  %v134 = vld [vmem:[%s5] sm:$0xf]
  %v135 = vld [vmem:[%s5 + $0x4] sm:$0xf]
  %v136 = vld [vmem:[%s5 + $0x8] sm:$0xf]
  %v137 = vld [vmem:[%s5 + $0xc] sm:$0xf]
  %v138 = vld [vmem:[%s6] sm:$0x1]
  %v140 = vlaneseq
  %v141 = vshrl.u32 %v140, 7
  %v142 = vsub.s32 0, %v141
  %v143 = vrot.slane %v138, %v142
  %v149 = vunpack.c.l.b16 %v134
  %v150 = vunpack.c.l.b16 %v135
  %v151 = vunpack.c.l.b16 %v136
  %v152 = vunpack.c.l.b16 %v137
  %v153 = vpack.c.b16 %v150, %v149
  %v154 = vpack.c.b16 %v152, %v151
  %vm157 = vcmask 261120
  %v159 = vsel %vm157, %v133, 0
  %161 = vmatprep.subr.bf16.mxu0 0
  %162 = vmatpush1.bf16.msra.mxu0 %v153
  %163 = vmatprep.subr.bf16.mxu0 0
  %164 = vmatpush1.bf16.msra.mxu0 %v154
  %165 = vmatprep.subr.bf16.mxu0 0
  %166 = vmatpush1.bf16.msra.mxu0 0
  %167 = vmatprep.subr.bf16.mxu0 0
  %168 = vmatpush1.bf16.msra.mxu0 0
  %169 = vmatprep.subr.bf16.mxu0 0
  %170 = vmatpush1.bf16.msra.mxu0 0
  %171 = vmatprep.subr.bf16.mxu0 0
  %172 = vmatpush1.bf16.msra.mxu0 0
  %173 = vmatprep.subr.bf16.mxu0 0
  %174 = vmatpush1.bf16.msra.mxu0 0
  %175 = vmatprep.subr.bf16.mxu0 0
  %176 = vmatpush1.bf16.msra.mxu0 0
  %177 = vmatprep.subr.bf16.mxu0 0
  %178 = vmatpush1.bf16.msra.mxu0 0
  %179 = vmatprep.subr.bf16.mxu0 0
  %180 = vmatpush1.bf16.msra.mxu0 0
  %181 = vmatprep.subr.bf16.mxu0 0
  %182 = vmatpush1.bf16.msra.mxu0 0
  %183 = vmatprep.subr.bf16.mxu0 0
  %184 = vmatpush1.bf16.msra.mxu0 0
  %185 = vmatprep.subr.bf16.mxu0 0
  %186 = vmatpush1.bf16.msra.mxu0 0
  %187 = vmatprep.subr.bf16.mxu0 0
  %188 = vmatpush1.bf16.msra.mxu0 0
  %189 = vmatprep.subr.bf16.mxu0 0
  %190 = vmatpush1.bf16.msra.mxu0 0
  %191 = vmatprep.subr.bf16.mxu0 0
  %192 = vmatpush1.bf16.msra.mxu0 0
  %193 = vmatprep.mubr.bf16.mxu0 0
  %194 = vmatmul.mubr.bf16.gmra.mrb[0].mxu0 %v159
  %v195 = vpop.f32.mrb[0].mxu0
  %v196 = vadd.f32 %v143, %v195
  %v197 = vpop.f32.mrb[0].mxu0
  %v198 = vpop.f32.mrb[0].mxu0
  %v199 = vadd.f32 %v143, %v198
  %v200 = vpop.f32.mrb[0].mxu0
  %201 = vdwg.mxu0
  %v202 = vlaneseq
  %v203 = vshrl.u32 %v202, 7
  %v204 = vadd.s32 %v203, 8
  %v205 = vld [vmem:[%s2] sm:$0x1]
  %v206 = vlaneseq
  %v207 = vshrl.u32 %v206, 7
  %v208 = vsub.s32 0, %v207
  %v209 = vrot.slane %v205, %v208
  %vm210 = vcmp.eq.s32.totalorder %v203, %v209
  %vm211 = vcmp.eq.s32.totalorder %v204, %v209
  %v212 = vsel %vm210, 1, 0
  %v213 = vsel %vm211, 1, 0
  %v214 = vcvt.s32.f32 %v212
  %v215 = vcvt.s32.f32 %v213
  %v216 = vpack.c.bf16 %v215, %v214
  %v217 = vld [vmem:[#allocation2] sm:$0xff]
  %v218 = vld [vmem:[#allocation2 + $0x8] sm:$0xff]
  %v219 = vpack.c.bf16 %v199, %v196
  %v221 = vsel %vm88, %v216, 0
  %223 = vmatprep.subr.bf16.mxu0 0
  %224 = vmatpush1.bf16.msra.mxu0 %v219
  %225 = vmatprep.subr.bf16.mxu0 0
  %226 = vmatpush1.bf16.msra.mxu0 0
  %227 = vmatprep.subr.bf16.mxu0 0
  %228 = vmatpush1.bf16.msra.mxu0 0
  %229 = vmatprep.subr.bf16.mxu0 0
  %230 = vmatpush1.bf16.msra.mxu0 0
  %231 = vmatprep.subr.bf16.mxu0 0
  %232 = vmatpush1.bf16.msra.mxu0 0
  %233 = vmatprep.subr.bf16.mxu0 0
  %234 = vmatpush1.bf16.msra.mxu0 0
  %235 = vmatprep.subr.bf16.mxu0 0
  %236 = vmatpush1.bf16.msra.mxu0 0
  %237 = vmatprep.subr.bf16.mxu0 0
  %238 = vmatpush1.bf16.msra.mxu0 0
  %239 = vmatprep.subr.bf16.mxu0 0
  %240 = vmatpush1.bf16.msra.mxu0 0
  %241 = vmatprep.subr.bf16.mxu0 0
  %242 = vmatpush1.bf16.msra.mxu0 0
  %243 = vmatprep.subr.bf16.mxu0 0
  %244 = vmatpush1.bf16.msra.mxu0 0
  %245 = vmatprep.subr.bf16.mxu0 0
  %246 = vmatpush1.bf16.msra.mxu0 0
  %247 = vmatprep.subr.bf16.mxu0 0
  %248 = vmatpush1.bf16.msra.mxu0 0
  %249 = vmatprep.subr.bf16.mxu0 0
  %250 = vmatpush1.bf16.msra.mxu0 0
  %251 = vmatprep.subr.bf16.mxu0 0
  %252 = vmatpush1.bf16.msra.mxu0 0
  %253 = vmatprep.subr.bf16.mxu0 0
  %254 = vmatpush1.bf16.msra.mxu0 0
  %255 = vmatprep.mubr.bf16.mxu0 0
  %256 = vmatmul.mubr.bf16.gmra.mrb[0].mxu0 %v221
  %v257 = vpop.f32.mrb[0].mxu0
  %v258 = vadd.f32 0.0, %v257
  %v259 = vpop.f32.mrb[0].mxu0
  %v260 = vpop.f32.mrb[0].mxu0
  %v261 = vadd.f32 0.0, %v260
  %v262 = vpop.f32.mrb[0].mxu0
  %263 = vdwg.mxu0
  %v264 = vadd.f32 %v217, %v258
  %v265 = vadd.f32 %v218, %v261
  %vm266 = vcmask 64512
  %267 = vst.msk [vmem:[#allocation2] sm:$0xff] %vm266, %v264
  %268 = vst.msk [vmem:[#allocation2 + $0x8] sm:$0xff] %vm266, %v265
  %v269 = vld [vmem:[%s1] sm:$0xff]
  %v270 = vld [vmem:[%s1 + $0x8] sm:$0xff]
  %v271 = vadd.f32 %v196, %v269
  %v272 = vadd.f32 %v199, %v270
  %273 = vst.msk [vmem:[%s16] sm:$0xff] %vm266, %v271
  %274 = vst.msk [vmem:[%s16 + $0x8] sm:$0xff] %vm266, %v272
  // Predicated region
  $region70: #{graph_network_forward.3} parent=0 // pred_check
    %p275 = pneg %p56
  $region71: #{graph_network_forward.3} parent=0 // pred_check_branch
    %277 = sbr.rel (%p275) target = $region73
  $region72: #{graph_network_forward.3} parent=0 // pred_region
    %v278 = vld [vmem:[#allocation2] sm:$0xff]
    %v279 = vld [vmem:[#allocation2 + $0x8] sm:$0xff]
    %v280 = vld [vmem:[%s15] sm:$0xff]
    %v281 = vld [vmem:[%s15 + $0x8] sm:$0xff]
    %283 = vset.pattern.permute.xlu0 0
    %284 = vperm.xlu0 %283, %v280
    %v285 = vpop.permute.xlu0 %284
    %288 = vset.pattern.permute.xlu0 0
    %289 = vperm.xlu0 %288, %v281
    %v290 = vpop.permute.xlu0 %289
    %v292 = vmul.f32 %v278, %v285
    %v293 = vmul.f32 %v279, %v290
    %v294 = vld [vmem:[%s7] sm:$0xff]
    %v295 = vld [vmem:[%s7 + $0x8] sm:$0xff]
    %v296 = vld [vmem:[%s8] sm:$0xff]
    %v297 = vld [vmem:[%s8 + $0x8] sm:$0xff]
    %v298 = vpack.c.bf16 %v295, %v294
    %v299 = vld [vmem:[%s9] sm:$0x3]
    %v300 = vpack.c.bf16 %v293, %v292
    %v301 = vld [vmem:[%s10] sm:$0xf]
    %v303 = vsel %vm266, %v300, 0
    %vm305 = vcmask 1043456
    %v307 = vsel %vm305, %v301, 0
    %309 = vmatprep.subr.bf16.mxu0 0
    %310 = vmatpush1.bf16.msra.mxu0 %v307
    %311 = vmatprep.subr.bf16.mxu0 0
    %312 = vmatpush1.bf16.msra.mxu0 0
    %313 = vmatprep.subr.bf16.mxu0 0
    %314 = vmatpush1.bf16.msra.mxu0 0
    %315 = vmatprep.subr.bf16.mxu0 0
    %316 = vmatpush1.bf16.msra.mxu0 0
    %317 = vmatprep.subr.bf16.mxu0 0
    %318 = vmatpush1.bf16.msra.mxu0 0
    %319 = vmatprep.subr.bf16.mxu0 0
    %320 = vmatpush1.bf16.msra.mxu0 0
    %321 = vmatprep.subr.bf16.mxu0 0
    %322 = vmatpush1.bf16.msra.mxu0 0
    %323 = vmatprep.subr.bf16.mxu0 0
    %324 = vmatpush1.bf16.msra.mxu0 0
    %325 = vmatprep.subr.bf16.mxu0 0
    %326 = vmatpush1.bf16.msra.mxu0 0
    %327 = vmatprep.subr.bf16.mxu0 0
    %328 = vmatpush1.bf16.msra.mxu0 0
    %329 = vmatprep.subr.bf16.mxu0 0
    %330 = vmatpush1.bf16.msra.mxu0 0
    %331 = vmatprep.subr.bf16.mxu0 0
    %332 = vmatpush1.bf16.msra.mxu0 0
    %333 = vmatprep.subr.bf16.mxu0 0
    %334 = vmatpush1.bf16.msra.mxu0 0
    %335 = vmatprep.subr.bf16.mxu0 0
    %336 = vmatpush1.bf16.msra.mxu0 0
    %337 = vmatprep.subr.bf16.mxu0 0
    %338 = vmatpush1.bf16.msra.mxu0 0
    %339 = vmatprep.subr.bf16.mxu0 0
    %340 = vmatpush1.bf16.msra.mxu0 0
    %341 = vmatprep.mubr.bf16.mxu0 0
    %342 = vmatmul.mubr.bf16.gmra.mrb[0].mxu0 %v303
    %v343 = vpop.f32.mrb[0].mxu0
    %v344 = vadd.f32 0.0, %v343
    %v345 = vpop.f32.mrb[0].mxu0
    %v346 = vpop.f32.mrb[0].mxu0
    %v347 = vadd.f32 0.0, %v346
    %v348 = vpop.f32.mrb[0].mxu0
    %349 = vdwg.mxu0
    %vm350 = vcmask 31744
    %v352 = vsel %vm350, %v298, 0
    %vm354 = vcmask 1041408
    %v356 = vsel %vm354, %v299, 0
    %358 = vmatprep.subr.bf16.mxu0 0
    %359 = vmatpush1.bf16.msra.mxu0 %v356
    %360 = vmatprep.subr.bf16.mxu0 0
    %361 = vmatpush1.bf16.msra.mxu0 0
    %362 = vmatprep.subr.bf16.mxu0 0
    %363 = vmatpush1.bf16.msra.mxu0 0
    %364 = vmatprep.subr.bf16.mxu0 0
    %365 = vmatpush1.bf16.msra.mxu0 0
    %366 = vmatprep.subr.bf16.mxu0 0
    %367 = vmatpush1.bf16.msra.mxu0 0
    %368 = vmatprep.subr.bf16.mxu0 0
    %369 = vmatpush1.bf16.msra.mxu0 0
    %370 = vmatprep.subr.bf16.mxu0 0
    %371 = vmatpush1.bf16.msra.mxu0 0
    %372 = vmatprep.subr.bf16.mxu0 0
    %373 = vmatpush1.bf16.msra.mxu0 0
    %374 = vmatprep.subr.bf16.mxu0 0
    %375 = vmatpush1.bf16.msra.mxu0 0
    %376 = vmatprep.subr.bf16.mxu0 0
    %377 = vmatpush1.bf16.msra.mxu0 0
    %378 = vmatprep.subr.bf16.mxu0 0
    %379 = vmatpush1.bf16.msra.mxu0 0
    %380 = vmatprep.subr.bf16.mxu0 0
    %381 = vmatpush1.bf16.msra.mxu0 0
    %382 = vmatprep.subr.bf16.mxu0 0
    %383 = vmatpush1.bf16.msra.mxu0 0
    %384 = vmatprep.subr.bf16.mxu0 0
    %385 = vmatpush1.bf16.msra.mxu0 0
    %386 = vmatprep.subr.bf16.mxu0 0
    %387 = vmatpush1.bf16.msra.mxu0 0
    %388 = vmatprep.subr.bf16.mxu0 0
    %389 = vmatpush1.bf16.msra.mxu0 0
    %390 = vmatprep.mubr.bf16.mxu0 0
    %391 = vmatmul.mubr.bf16.gmra.mrb[0].mxu0 %v352
    %v392 = vpop.f32.mrb[0].mxu0
    %v393 = vadd.f32 %v344, %v392
    %v394 = vpop.f32.mrb[0].mxu0
    %v395 = vpop.f32.mrb[0].mxu0
    %v396 = vadd.f32 %v347, %v395
    %v397 = vpop.f32.mrb[0].mxu0
    %398 = vdwg.mxu0
    %v399 = vpack.c.bf16 %v297, %v296
    %v400 = vld [vmem:[%s11] sm:$0x3]
    %v402 = vsel %vm350, %v399, 0
    %v405 = vsel %vm354, %v400, 0
    %407 = vmatprep.subr.bf16.mxu0 0
    %408 = vmatpush1.bf16.msra.mxu0 %v405
    %409 = vmatprep.subr.bf16.mxu0 0
    %410 = vmatpush1.bf16.msra.mxu0 0
    %411 = vmatprep.subr.bf16.mxu0 0
    %412 = vmatpush1.bf16.msra.mxu0 0
    %413 = vmatprep.subr.bf16.mxu0 0
    %414 = vmatpush1.bf16.msra.mxu0 0
    %415 = vmatprep.subr.bf16.mxu0 0
    %416 = vmatpush1.bf16.msra.mxu0 0
    %417 = vmatprep.subr.bf16.mxu0 0
    %418 = vmatpush1.bf16.msra.mxu0 0
    %419 = vmatprep.subr.bf16.mxu0 0
    %420 = vmatpush1.bf16.msra.mxu0 0
    %421 = vmatprep.subr.bf16.mxu0 0
    %422 = vmatpush1.bf16.msra.mxu0 0
    %423 = vmatprep.subr.bf16.mxu0 0
    %424 = vmatpush1.bf16.msra.mxu0 0
    %425 = vmatprep.subr.bf16.mxu0 0
    %426 = vmatpush1.bf16.msra.mxu0 0
    %427 = vmatprep.subr.bf16.mxu0 0
    %428 = vmatpush1.bf16.msra.mxu0 0
    %429 = vmatprep.subr.bf16.mxu0 0
    %430 = vmatpush1.bf16.msra.mxu0 0
    %431 = vmatprep.subr.bf16.mxu0 0
    %432 = vmatpush1.bf16.msra.mxu0 0
    %433 = vmatprep.subr.bf16.mxu0 0
    %434 = vmatpush1.bf16.msra.mxu0 0
    %435 = vmatprep.subr.bf16.mxu0 0
    %436 = vmatpush1.bf16.msra.mxu0 0
    %437 = vmatprep.subr.bf16.mxu0 0
    %438 = vmatpush1.bf16.msra.mxu0 0
    %439 = vmatprep.mubr.bf16.mxu0 0
    %440 = vmatmul.mubr.bf16.gmra.mrb[0].mxu0 %v402
    %v441 = vpop.f32.mrb[0].mxu0
    %v442 = vadd.f32 0.0, %v441
    %v443 = vpop.f32.mrb[0].mxu0
    %v444 = vpop.f32.mrb[0].mxu0
    %v445 = vadd.f32 0.0, %v444
    %v446 = vpop.f32.mrb[0].mxu0
    %447 = vdwg.mxu0
    %v448 = vadd.f32 %v393, %v442
    %v449 = vadd.f32 %v396, %v445
    %v450 = vld [vmem:[%s12] sm:$0x1]
    %v452 = vlaneseq
    %v453 = vshrl.u32 %v452, 7
    %v454 = vsub.s32 0, %v453
    %v455 = vrot.slane %v450, %v454
    %v457 = vadd.f32 %v448, %v455
    %v458 = vadd.f32 %v449, %v455
    %v459 = vpack.c.bf16 %v458, %v457
    %v460 = vld [vmem:[%s13] sm:$0xf]
    %v461 = vld [vmem:[%s13 + $0x4] sm:$0xf]
    %v462 = vld [vmem:[%s13 + $0x8] sm:$0xf]
    %v463 = vld [vmem:[%s13 + $0xc] sm:$0xf]
    %v464 = vld [vmem:[%s14] sm:$0x1]
    %v466 = vlaneseq
    %v467 = vshrl.u32 %v466, 7
    %v468 = vsub.s32 0, %v467
    %v469 = vrot.slane %v464, %v468
    %v475 = vunpack.c.l.b16 %v460
    %v476 = vunpack.c.l.b16 %v461
    %v477 = vunpack.c.l.b16 %v462
    %v478 = vunpack.c.l.b16 %v463
    %v479 = vpack.c.b16 %v476, %v475
    %v480 = vpack.c.b16 %v478, %v477
    %v484 = vsel %vm157, %v459, 0
    %486 = vmatprep.subr.bf16.mxu0 0
    %487 = vmatpush1.bf16.msra.mxu0 %v479
    %488 = vmatprep.subr.bf16.mxu0 0
    %489 = vmatpush1.bf16.msra.mxu0 %v480
    %490 = vmatprep.subr.bf16.mxu0 0
    %491 = vmatpush1.bf16.msra.mxu0 0
    %492 = vmatprep.subr.bf16.mxu0 0
    %493 = vmatpush1.bf16.msra.mxu0 0
    %494 = vmatprep.subr.bf16.mxu0 0
    %495 = vmatpush1.bf16.msra.mxu0 0
    %496 = vmatprep.subr.bf16.mxu0 0
    %497 = vmatpush1.bf16.msra.mxu0 0
    %498 = vmatprep.subr.bf16.mxu0 0
    %499 = vmatpush1.bf16.msra.mxu0 0
    %500 = vmatprep.subr.bf16.mxu0 0
    %501 = vmatpush1.bf16.msra.mxu0 0
    %502 = vmatprep.subr.bf16.mxu0 0
    %503 = vmatpush1.bf16.msra.mxu0 0
    %504 = vmatprep.subr.bf16.mxu0 0
    %505 = vmatpush1.bf16.msra.mxu0 0
    %506 = vmatprep.subr.bf16.mxu0 0
    %507 = vmatpush1.bf16.msra.mxu0 0
    %508 = vmatprep.subr.bf16.mxu0 0
    %509 = vmatpush1.bf16.msra.mxu0 0
    %510 = vmatprep.subr.bf16.mxu0 0
    %511 = vmatpush1.bf16.msra.mxu0 0
    %512 = vmatprep.subr.bf16.mxu0 0
    %513 = vmatpush1.bf16.msra.mxu0 0
    %514 = vmatprep.subr.bf16.mxu0 0
    %515 = vmatpush1.bf16.msra.mxu0 0
    %516 = vmatprep.subr.bf16.mxu0 0
    %517 = vmatpush1.bf16.msra.mxu0 0
    %518 = vmatprep.mubr.bf16.mxu0 0
    %519 = vmatmul.mubr.bf16.gmra.mrb[0].mxu0 %v484
    %v520 = vpop.f32.mrb[0].mxu0
    %v521 = vadd.f32 %v469, %v520
    %v522 = vpop.f32.mrb[0].mxu0
    %v523 = vpop.f32.mrb[0].mxu0
    %v524 = vadd.f32 %v469, %v523
    %v525 = vpop.f32.mrb[0].mxu0
    %526 = vdwg.mxu0
    %v527 = vadd.f32 %v521, %v296
    %v528 = vadd.f32 %v524, %v297
    %529 = vst.msk [vmem:[%s17] sm:$0xff] %vm350, %v527
    %530 = vst.msk [vmem:[%s17 + $0x8] sm:$0xff] %vm350, %v528
  $region73: #{graph_network_forward.3} parent=0 // pred_fallthru
    _
  // Predicated region
  $region74: #{graph_network_forward.3} parent=0 // pred_check
    _
  $region75: #{graph_network_forward.3} parent=0 // pred_check_branch
    %532 = sbr.rel (0) target = $region77
  $region76: #{graph_network_forward.3} parent=0 // pred_region
    _
  $region77: #{graph_network_forward.3} parent=0 // pred_fallthru
    _
  // Predicated region
  $region78: #{graph_network_forward.3} parent=0 // pred_check
    _
  $region79: #{graph_network_forward.3} parent=0 // pred_check_branch
    %534 = sbr.rel (0) target = $region81
  $region80: #{graph_network_forward.3} parent=0 // pred_region
    _
  $region81: #{graph_network_forward.3} parent=0 // pred_fallthru
    _
  // Predicated region
  $region82: #{graph_network_forward.3} parent=0 // pred_check
    _
  $region83: #{graph_network_forward.3} parent=0 // pred_check_branch
    %536 = sbr.rel (0) target = $region85
  $region84: #{graph_network_forward.3} parent=0 // pred_region
    _
  $region85: #{graph_network_forward.3} parent=0 // pred_fallthru
    _
  // Predicated region
  $region86: #{graph_network_forward.3} parent=0 // pred_check
    _
  $region87: #{graph_network_forward.3} parent=0 // pred_check_branch
    %538 = sbr.rel (0) target = $region89
  $region88: #{graph_network_forward.3} parent=0 // pred_region
    _
  $region89: #{graph_network_forward.3} parent=0 // pred_fallthru
    _

</llo_original>
